<compile_context>
chip_gen: v7x
topology: tpu7x:2x2x1
jax: 0.10.0
libtpu: 0.0.40
codegen_flags: <defaults>
</compile_context>

<pallas_src>
import functools

import jax
import jax.numpy as jnp
from jax import lax
from jax.experimental import pallas as pl
from jax.experimental.pallas import tpu as pltpu

BN_EPS = 1e-5


def _vmem_limit(block_bytes_total):
    # double-buffered blocks + headroom, capped at 32 MiB (v7x-safe).
    need = 2 * int(block_bytes_total) + (2 << 20)
    return int(min(32 * 1024 * 1024, max(4 * 1024 * 1024, need)))


def _h_tile(h_out):
    # largest tile <= 64 output rows that divides h_out and is sublane (8) aligned
    if h_out % 8 != 0 or h_out <= 64:
        return h_out
    t = 64
    while h_out % t:
        t -= 8
    return t


def _make_conv_stats_kernel(taps, c_in, c_out, m_wide):
    """Pass 1: fused im2col-free conv (kh*kw accumulated matmuls) + BN stats.

    xf_ref:   (1, s*s*C_in, L)   bf16 phase-split input, one batch image
    w_ref:    (kh*kw, C_out, C_in) bf16 per-tap weights
    mask_ref: (1, M)             f32 1.0 for real output columns, 0.0 for phantoms
    conv_ref: (1, C_out, M)      f32 conv output ("wide" rows, bias-free)
    sum_ref:  (1, C_out, 1)      f32 per-image per-channel sum
    sq_ref:   (1, C_out, 1)      f32 per-image per-channel sum of squares
    """

    def kernel(xf_ref, w_ref, mask_ref, conv_ref, sum_ref, sq_ref):
        acc = jnp.zeros((c_out, m_wide), jnp.float32)
        for t, ph, off in taps:
            # contiguous static slice: phase `ph`, flat offset `off`
            xs = xf_ref[0, ph * c_in:(ph + 1) * c_in, off:off + m_wide]  # (C_in, M) bf16
            acc = acc + jnp.dot(w_ref[t], xs, preferred_element_type=jnp.float32)
        conv_ref[0] = acc
        masked = acc * mask_ref[...]                 # phantom columns -> 0
        sum_ref[0] = jnp.sum(masked, axis=-1, keepdims=True)
        sq_ref[0] = jnp.sum(masked * acc, axis=-1, keepdims=True)

    return kernel


def _bn_relu_kernel(conv_ref, scale_ref, shift_ref, o_ref):
    """Pass 2: folded BN affine + ReLU; drops phantom columns on the fly."""
    w_out = o_ref.shape[-1]
    y = conv_ref[0, :, :, :w_out] * scale_ref[...] + shift_ref[...]
    o_ref[0] = jnp.maximum(y, 0.0).astype(o_ref.dtype)


@functools.partial(jax.jit, static_argnames=("stride", "padding"))
def downsampling_forward(x, conv_w, conv_b, bn_gamma, bn_beta, *, stride, padding):
    """Forward pass matching Downsampling.forward on NCHW input x."""
    del conv_b  # mathematically cancelled by the BN batch-mean subtraction
    n, c_in, h, w = x.shape
    c_out, _, kh, kw = conv_w.shape
    s = stride
    h_out = (h + 2 * padding - kh) // s + 1
    w_out = (w + 2 * padding - kw) // s + 1
    max_dy = (kh - 1) // s
    max_dx = (kw - 1) // s

    # phase-grid geometry: Wh columns per wide output row (>= W_out; extras are phantoms)
    hh = max(h_out + max_dy + 1, -(-(h + 2 * padding) // s))
    wh = max(w_out + max_dx, -(-(w + 2 * padding) // s))
    he, we = s * hh, s * wh
    l_flat = hh * wh
    m_wide = h_out * wh

    # ---- layout-only XLA prologue: zero-pad, phase split (space-to-batch), bf16 ----
    xe = jnp.pad(x, ((0, 0), (0, 0),
                     (padding, he - h - padding),
                     (padding, we - w - padding)))
    xph = xe.reshape(n, c_in, hh, s, wh, s).transpose(0, 3, 5, 1, 2, 4)
    xf = xph.astype(jnp.bfloat16).reshape(n, s * s * c_in, l_flat)

    # per-tap weights, tap order matches the in-kernel loop
    w_taps = jnp.transpose(conv_w, (2, 3, 0, 1)).reshape(kh * kw, c_out, c_in)
    w_taps = w_taps.astype(jnp.bfloat16)

    taps = []
    for ki in range(kh):
        for kj in range(kw):
            ph = (ki % s) * s + (kj % s)
            off = (ki // s) * wh + (kj // s)
            taps.append((ki * kw + kj, ph, off))
    taps = tuple(taps)

    # statistics mask: 1 on real output columns, 0 on phantom columns
    col = jnp.arange(m_wide, dtype=jnp.int32) % wh
    mask = (col < w_out).astype(jnp.float32).reshape(1, m_wide)

    xf_bytes = s * s * c_in * l_flat * 2
    w_bytes = kh * kw * c_out * c_in * 2
    conv_bytes = c_out * m_wide * 4
    vmem1 = _vmem_limit(xf_bytes + w_bytes + m_wide * 4 + 2 * conv_bytes)
    cost = pl.CostEstimate(
        flops=2 * n * kh * kw * c_out * c_in * m_wide,
        transcendentals=0,
        bytes_accessed=n * (xf_bytes + conv_bytes + 2 * c_out * 4) + w_bytes,
    )

    conv_wide, ch_sum, ch_sq = pl.pallas_call(
        _make_conv_stats_kernel(taps, c_in, c_out, m_wide),
        out_shape=(
            jax.ShapeDtypeStruct((n, c_out, m_wide), jnp.float32),
            jax.ShapeDtypeStruct((n, c_out, 1), jnp.float32),
            jax.ShapeDtypeStruct((n, c_out, 1), jnp.float32),
        ),
        grid=(n,),
        in_specs=[
            pl.BlockSpec((1, s * s * c_in, l_flat), lambda i: (i, 0, 0)),
            pl.BlockSpec((kh * kw, c_out, c_in), lambda i: (0, 0, 0)),
            pl.BlockSpec((1, m_wide), lambda i: (0, 0)),
        ],
        out_specs=[
            pl.BlockSpec((1, c_out, m_wide), lambda i: (i, 0, 0)),
            pl.BlockSpec((1, c_out, 1), lambda i: (i, 0, 0)),
            pl.BlockSpec((1, c_out, 1), lambda i: (i, 0, 0)),
        ],
        compiler_params=pltpu.CompilerParams(
            dimension_semantics=("parallel",),
            vmem_limit_bytes=vmem1,
        ),
        cost_estimate=cost,
    )(xf, w_taps, mask)

    # ---- fold BN (training-mode batch stats, biased variance) into scale/shift ----
    cnt = jnp.float32(n * h_out * w_out)
    mean = jnp.sum(ch_sum[:, :, 0], axis=0) / cnt            # (C_out,)
    ex2 = jnp.sum(ch_sq[:, :, 0], axis=0) / cnt              # (C_out,)
    var = jnp.maximum(ex2 - mean * mean, 0.0)
    inv_std = lax.rsqrt(var + BN_EPS)
    scale = (bn_gamma * inv_std).reshape(c_out, 1, 1).astype(jnp.float32)
    shift = (bn_beta - mean * bn_gamma * inv_std).reshape(c_out, 1, 1).astype(jnp.float32)

    # ---- pass 2: affine + ReLU, writes NCHW directly (no extra XLA copy) ----
    conv4 = conv_wide.reshape(n, c_out, h_out, wh)           # free, contiguous view
    th = _h_tile(h_out)
    vmem2 = _vmem_limit(c_out * th * (wh + w_out) * 4)

    out = pl.pallas_call(
        _bn_relu_kernel,
        out_shape=jax.ShapeDtypeStruct((n, c_out, h_out, w_out), x.dtype),
        grid=(n, h_out // th),
        in_specs=[
            pl.BlockSpec((1, c_out, th, wh), lambda i, j: (i, 0, j, 0)),
            pl.BlockSpec((c_out, 1, 1), lambda i, j: (0, 0, 0)),
            pl.BlockSpec((c_out, 1, 1), lambda i, j: (0, 0, 0)),
        ],
        out_specs=pl.BlockSpec((1, c_out, th, w_out), lambda i, j: (i, 0, j, 0)),
        compiler_params=pltpu.CompilerParams(
            dimension_semantics=("parallel", "parallel"),
            vmem_limit_bytes=vmem2,
        ),
    )(conv4, scale, shift)
    return out


def _reference(x, conv_w, conv_b, bn_gamma, bn_beta, stride, padding):
    y = lax.conv_general_dilated(
        x, conv_w, window_strides=(stride, stride),
        padding=((padding, padding), (padding, padding)),
        dimension_numbers=("NCHW", "OIHW", "NCHW"),
    ) + conv_b.reshape(1, -1, 1, 1)
    mean = jnp.mean(y, axis=(0, 2, 3), keepdims=True)
    var = jnp.mean((y - mean) ** 2, axis=(0, 2, 3), keepdims=True)
    yn = (y - mean) * lax.rsqrt(var + BN_EPS)
    yn = yn * bn_gamma.reshape(1, -1, 1, 1) + bn_beta.reshape(1, -1, 1, 1)
    return jnp.maximum(yn, 0.0)


if __name__ == "__main__":
    # Module config (small, consistent with a downsampling block).
    in_channels, out_channels = 4, 8
    kernel_size, stride, padding = 3, 2, 1
    N, H, W = 2, 16, 16

    key = jax.random.PRNGKey(0)
    kx, kw_, kb, kg, kbt = jax.random.split(key, 5)

    x = jax.random.normal(kx, (N, in_channels, H, W), dtype=jnp.float32)
    conv_w = 0.1 * jax.random.normal(
        kw_, (out_channels, in_channels, kernel_size, kernel_size), dtype=jnp.float32
    )
    conv_b = 0.1 * jax.random.normal(kb, (out_channels,), dtype=jnp.float32)
    bn_gamma = 1.0 + 0.1 * jax.random.normal(kg, (out_channels,), dtype=jnp.float32)
    bn_beta = 0.1 * jax.random.normal(kbt, (out_channels,), dtype=jnp.float32)

    out = downsampling_forward(
        x, conv_w, conv_b, bn_gamma, bn_beta, stride=stride, padding=padding
    )
    out = jax.block_until_ready(out)
    assert out.shape == (N, out_channels, H // stride, W // stride), out.shape

    # Matched-precision reference (same bf16 rounding of the matmul inputs as
    # the kernel, everything else f32): tight check of the kernel structure.
    ref_match = _reference(
        x.astype(jnp.bfloat16).astype(jnp.float32),
        conv_w.astype(jnp.bfloat16).astype(jnp.float32),
        conv_b, bn_gamma, bn_beta, stride, padding,
    )
    err_m = float(jnp.max(jnp.abs(out - ref_match)))
    assert jnp.allclose(out, ref_match, atol=2e-3, rtol=2e-3), err_m

    # Full-f32 reference: sanity check (difference is the deliberate bf16 MXU input cast).
    ref_f32 = _reference(x, conv_w, conv_b, bn_gamma, bn_beta, stride, padding)
    err_f = float(jnp.max(jnp.abs(out - ref_f32)))
    assert jnp.allclose(out, ref_f32, atol=3e-2, rtol=3e-2), err_f

    print("KERNEL_OK")
</pallas_src>

<mosaic_0001>
module attributes {stable_mosaic.version = 11 : i64} {
  func.func @kernel(%arg0: i32, %arg1: memref<1x16x90xbf16, #tpu.memory_space<vmem>>, %arg2: memref<9x8x4xbf16, #tpu.memory_space<vmem>>, %arg3: memref<1x72xf32, #tpu.memory_space<vmem>>, %arg4: memref<1x8x72xf32, #tpu.memory_space<vmem>>, %arg5: memref<1x8x1xf32, #tpu.memory_space<vmem>>, %arg6: memref<1x8x1xf32, #tpu.memory_space<vmem>>) attributes {dimension_semantics = [#tpu.dimension_semantics<parallel>], iteration_bounds = array<i64: 2>, scalar_prefetch = 0 : i64, scratch_operands = 0 : i64, tpu.core_type = #tpu.core_type<tc>, window_params = [{transform_indices = @transform_0, window_bounds = array<i64: 1, 16, 90>}, {pipeline_mode = #tpu.pipeline_mode<synchronous>, transform_indices = @transform_1, window_bounds = array<i64: 9, 8, 4>}, {pipeline_mode = #tpu.pipeline_mode<synchronous>, transform_indices = @transform_2, window_bounds = array<i64: 1, 72>}, {transform_indices = @transform_3, window_bounds = array<i64: 1, 8, 72>}, {transform_indices = @transform_4, window_bounds = array<i64: 1, 8, 1>}, {transform_indices = @transform_5, window_bounds = array<i64: 1, 8, 1>}]} {
    %cst = arith.constant 0.000000e+00 : f32
    %0 = vector.broadcast %cst : f32 to vector<8x72xf32>
    %c0 = arith.constant 0 : index
    %c0_0 = arith.constant 0 : index
    %c0_1 = arith.constant 0 : index
    %1 = vector.load %arg1[%c0, %c0_0, %c0_1] : memref<1x16x90xbf16, #tpu.memory_space<vmem>>, vector<1x4x72xbf16>
    %2 = vector.shape_cast %1 : vector<1x4x72xbf16> to vector<4x72xbf16>
    %c0_2 = arith.constant 0 : index
    %c0_3 = arith.constant 0 : index
    %c0_4 = arith.constant 0 : index
    %3 = vector.load %arg2[%c0_2, %c0_3, %c0_4] : memref<9x8x4xbf16, #tpu.memory_space<vmem>>, vector<1x8x4xbf16>
    %4 = vector.shape_cast %3 : vector<1x8x4xbf16> to vector<8x4xbf16>
    %cst_5 = arith.constant dense<0.000000e+00> : vector<8x72xf32>
    %5 = tpu.matmul %4, %2, %cst_5 {dimension_numbers = #tpu.dot_dimension_numbers<[1], [0], [0], [1], [0, 0, 1, 1], [], []>} : vector<8x4xbf16>, vector<4x72xbf16>, vector<8x72xf32> -> vector<8x72xf32>
    %6 = arith.addf %0, %5 : vector<8x72xf32>
    %c0_6 = arith.constant 0 : index
    %c4 = arith.constant 4 : index
    %c0_7 = arith.constant 0 : index
    %7 = vector.load %arg1[%c0_6, %c4, %c0_7] : memref<1x16x90xbf16, #tpu.memory_space<vmem>>, vector<1x4x72xbf16>
    %8 = vector.shape_cast %7 : vector<1x4x72xbf16> to vector<4x72xbf16>
    %c1 = arith.constant 1 : index
    %c0_8 = arith.constant 0 : index
    %c0_9 = arith.constant 0 : index
    %9 = vector.load %arg2[%c1, %c0_8, %c0_9] : memref<9x8x4xbf16, #tpu.memory_space<vmem>>, vector<1x8x4xbf16>
    %10 = vector.shape_cast %9 : vector<1x8x4xbf16> to vector<8x4xbf16>
    %cst_10 = arith.constant dense<0.000000e+00> : vector<8x72xf32>
    %11 = tpu.matmul %10, %8, %cst_10 {dimension_numbers = #tpu.dot_dimension_numbers<[1], [0], [0], [1], [0, 0, 1, 1], [], []>} : vector<8x4xbf16>, vector<4x72xbf16>, vector<8x72xf32> -> vector<8x72xf32>
    %12 = arith.addf %6, %11 : vector<8x72xf32>
    %c0_11 = arith.constant 0 : index
    %c0_12 = arith.constant 0 : index
    %c1_13 = arith.constant 1 : index
    %13 = vector.load %arg1[%c0_11, %c0_12, %c1_13] : memref<1x16x90xbf16, #tpu.memory_space<vmem>>, vector<1x4x72xbf16>
    %14 = vector.shape_cast %13 : vector<1x4x72xbf16> to vector<4x72xbf16>
    %c2 = arith.constant 2 : index
    %c0_14 = arith.constant 0 : index
    %c0_15 = arith.constant 0 : index
    %15 = vector.load %arg2[%c2, %c0_14, %c0_15] : memref<9x8x4xbf16, #tpu.memory_space<vmem>>, vector<1x8x4xbf16>
    %16 = vector.shape_cast %15 : vector<1x8x4xbf16> to vector<8x4xbf16>
    %cst_16 = arith.constant dense<0.000000e+00> : vector<8x72xf32>
    %17 = tpu.matmul %16, %14, %cst_16 {dimension_numbers = #tpu.dot_dimension_numbers<[1], [0], [0], [1], [0, 0, 1, 1], [], []>} : vector<8x4xbf16>, vector<4x72xbf16>, vector<8x72xf32> -> vector<8x72xf32>
    %18 = arith.addf %12, %17 : vector<8x72xf32>
    %c0_17 = arith.constant 0 : index
    %c8 = arith.constant 8 : index
    %c0_18 = arith.constant 0 : index
    %19 = vector.load %arg1[%c0_17, %c8, %c0_18] : memref<1x16x90xbf16, #tpu.memory_space<vmem>>, vector<1x4x72xbf16>
    %20 = vector.shape_cast %19 : vector<1x4x72xbf16> to vector<4x72xbf16>
    %c3 = arith.constant 3 : index
    %c0_19 = arith.constant 0 : index
    %c0_20 = arith.constant 0 : index
    %21 = vector.load %arg2[%c3, %c0_19, %c0_20] : memref<9x8x4xbf16, #tpu.memory_space<vmem>>, vector<1x8x4xbf16>
    %22 = vector.shape_cast %21 : vector<1x8x4xbf16> to vector<8x4xbf16>
    %cst_21 = arith.constant dense<0.000000e+00> : vector<8x72xf32>
    %23 = tpu.matmul %22, %20, %cst_21 {dimension_numbers = #tpu.dot_dimension_numbers<[1], [0], [0], [1], [0, 0, 1, 1], [], []>} : vector<8x4xbf16>, vector<4x72xbf16>, vector<8x72xf32> -> vector<8x72xf32>
    %24 = arith.addf %18, %23 : vector<8x72xf32>
    %c0_22 = arith.constant 0 : index
    %c12 = arith.constant 12 : index
    %c0_23 = arith.constant 0 : index
    %25 = vector.load %arg1[%c0_22, %c12, %c0_23] : memref<1x16x90xbf16, #tpu.memory_space<vmem>>, vector<1x4x72xbf16>
    %26 = vector.shape_cast %25 : vector<1x4x72xbf16> to vector<4x72xbf16>
    %c4_24 = arith.constant 4 : index
    %c0_25 = arith.constant 0 : index
    %c0_26 = arith.constant 0 : index
    %27 = vector.load %arg2[%c4_24, %c0_25, %c0_26] : memref<9x8x4xbf16, #tpu.memory_space<vmem>>, vector<1x8x4xbf16>
    %28 = vector.shape_cast %27 : vector<1x8x4xbf16> to vector<8x4xbf16>
    %cst_27 = arith.constant dense<0.000000e+00> : vector<8x72xf32>
    %29 = tpu.matmul %28, %26, %cst_27 {dimension_numbers = #tpu.dot_dimension_numbers<[1], [0], [0], [1], [0, 0, 1, 1], [], []>} : vector<8x4xbf16>, vector<4x72xbf16>, vector<8x72xf32> -> vector<8x72xf32>
    %30 = arith.addf %24, %29 : vector<8x72xf32>
    %c0_28 = arith.constant 0 : index
    %c8_29 = arith.constant 8 : index
    %c1_30 = arith.constant 1 : index
    %31 = vector.load %arg1[%c0_28, %c8_29, %c1_30] : memref<1x16x90xbf16, #tpu.memory_space<vmem>>, vector<1x4x72xbf16>
    %32 = vector.shape_cast %31 : vector<1x4x72xbf16> to vector<4x72xbf16>
    %c5 = arith.constant 5 : index
    %c0_31 = arith.constant 0 : index
    %c0_32 = arith.constant 0 : index
    %33 = vector.load %arg2[%c5, %c0_31, %c0_32] : memref<9x8x4xbf16, #tpu.memory_space<vmem>>, vector<1x8x4xbf16>
    %34 = vector.shape_cast %33 : vector<1x8x4xbf16> to vector<8x4xbf16>
    %cst_33 = arith.constant dense<0.000000e+00> : vector<8x72xf32>
    %35 = tpu.matmul %34, %32, %cst_33 {dimension_numbers = #tpu.dot_dimension_numbers<[1], [0], [0], [1], [0, 0, 1, 1], [], []>} : vector<8x4xbf16>, vector<4x72xbf16>, vector<8x72xf32> -> vector<8x72xf32>
    %36 = arith.addf %30, %35 : vector<8x72xf32>
    %c0_34 = arith.constant 0 : index
    %c0_35 = arith.constant 0 : index
    %c9 = arith.constant 9 : index
    %37 = vector.load %arg1[%c0_34, %c0_35, %c9] : memref<1x16x90xbf16, #tpu.memory_space<vmem>>, vector<1x4x72xbf16>
    %38 = vector.shape_cast %37 : vector<1x4x72xbf16> to vector<4x72xbf16>
    %c6 = arith.constant 6 : index
    %c0_36 = arith.constant 0 : index
    %c0_37 = arith.constant 0 : index
    %39 = vector.load %arg2[%c6, %c0_36, %c0_37] : memref<9x8x4xbf16, #tpu.memory_space<vmem>>, vector<1x8x4xbf16>
    %40 = vector.shape_cast %39 : vector<1x8x4xbf16> to vector<8x4xbf16>
    %cst_38 = arith.constant dense<0.000000e+00> : vector<8x72xf32>
    %41 = tpu.matmul %40, %38, %cst_38 {dimension_numbers = #tpu.dot_dimension_numbers<[1], [0], [0], [1], [0, 0, 1, 1], [], []>} : vector<8x4xbf16>, vector<4x72xbf16>, vector<8x72xf32> -> vector<8x72xf32>
    %42 = arith.addf %36, %41 : vector<8x72xf32>
    %c0_39 = arith.constant 0 : index
    %c4_40 = arith.constant 4 : index
    %c9_41 = arith.constant 9 : index
    %43 = vector.load %arg1[%c0_39, %c4_40, %c9_41] : memref<1x16x90xbf16, #tpu.memory_space<vmem>>, vector<1x4x72xbf16>
    %44 = vector.shape_cast %43 : vector<1x4x72xbf16> to vector<4x72xbf16>
    %c7 = arith.constant 7 : index
    %c0_42 = arith.constant 0 : index
    %c0_43 = arith.constant 0 : index
    %45 = vector.load %arg2[%c7, %c0_42, %c0_43] : memref<9x8x4xbf16, #tpu.memory_space<vmem>>, vector<1x8x4xbf16>
    %46 = vector.shape_cast %45 : vector<1x8x4xbf16> to vector<8x4xbf16>
    %cst_44 = arith.constant dense<0.000000e+00> : vector<8x72xf32>
    %47 = tpu.matmul %46, %44, %cst_44 {dimension_numbers = #tpu.dot_dimension_numbers<[1], [0], [0], [1], [0, 0, 1, 1], [], []>} : vector<8x4xbf16>, vector<4x72xbf16>, vector<8x72xf32> -> vector<8x72xf32>
    %48 = arith.addf %42, %47 : vector<8x72xf32>
    %c0_45 = arith.constant 0 : index
    %c0_46 = arith.constant 0 : index
    %c10 = arith.constant 10 : index
    %49 = vector.load %arg1[%c0_45, %c0_46, %c10] : memref<1x16x90xbf16, #tpu.memory_space<vmem>>, vector<1x4x72xbf16>
    %50 = vector.shape_cast %49 : vector<1x4x72xbf16> to vector<4x72xbf16>
    %c8_47 = arith.constant 8 : index
    %c0_48 = arith.constant 0 : index
    %c0_49 = arith.constant 0 : index
    %51 = vector.load %arg2[%c8_47, %c0_48, %c0_49] : memref<9x8x4xbf16, #tpu.memory_space<vmem>>, vector<1x8x4xbf16>
    %52 = vector.shape_cast %51 : vector<1x8x4xbf16> to vector<8x4xbf16>
    %cst_50 = arith.constant dense<0.000000e+00> : vector<8x72xf32>
    %53 = tpu.matmul %52, %50, %cst_50 {dimension_numbers = #tpu.dot_dimension_numbers<[1], [0], [0], [1], [0, 0, 1, 1], [], []>} : vector<8x4xbf16>, vector<4x72xbf16>, vector<8x72xf32> -> vector<8x72xf32>
    %54 = arith.addf %48, %53 : vector<8x72xf32>
    %c0_51 = arith.constant 0 : index
    %c0_52 = arith.constant 0 : index
    %c0_53 = arith.constant 0 : index
    %55 = vector.load %arg4[%c0_51, %c0_52, %c0_53] : memref<1x8x72xf32, #tpu.memory_space<vmem>>, vector<1x8x72xf32>
    %56 = vector.shape_cast %55 : vector<1x8x72xf32> to vector<8x72xf32>
    %57 = vector.shape_cast %54 : vector<8x72xf32> to vector<1x8x72xf32>
    tpu.vector_store %arg4[%c0_51, %c0_52, %c0_53], %57 {strides = array<i32>} : memref<1x8x72xf32, #tpu.memory_space<vmem>>, vector<1x8x72xf32>,
    %c0_54 = arith.constant 0 : index
    %c0_55 = arith.constant 0 : index
    %58 = vector.load %arg3[%c0_54, %c0_55] : memref<1x72xf32, #tpu.memory_space<vmem>>, vector<1x72xf32>
    %59 = vector.broadcast %58 : vector<1x72xf32> to vector<8x72xf32>
    %60 = arith.mulf %54, %59 : vector<8x72xf32>
    %cst_56 = arith.constant dense<0.000000e+00> : vector<8xf32>
    %61 = vector.multi_reduction <add>, %60, %cst_56 [1] : vector<8x72xf32> to vector<8xf32>
    %62 = vector.shape_cast %61 : vector<8xf32> to vector<8x1xf32>
    %c0_57 = arith.constant 0 : index
    %c0_58 = arith.constant 0 : index
    %c0_59 = arith.constant 0 : index
    %63 = vector.load %arg5[%c0_57, %c0_58, %c0_59] : memref<1x8x1xf32, #tpu.memory_space<vmem>>, vector<1x8x1xf32>
    %64 = vector.shape_cast %63 : vector<1x8x1xf32> to vector<8x1xf32>
    %65 = vector.shape_cast %62 : vector<8x1xf32> to vector<1x8x1xf32>
    tpu.vector_store %arg5[%c0_57, %c0_58, %c0_59], %65 {strides = array<i32>} : memref<1x8x1xf32, #tpu.memory_space<vmem>>, vector<1x8x1xf32>,
    %66 = arith.mulf %60, %54 : vector<8x72xf32>
    %cst_60 = arith.constant dense<0.000000e+00> : vector<8xf32>
    %67 = vector.multi_reduction <add>, %66, %cst_60 [1] : vector<8x72xf32> to vector<8xf32>
    %68 = vector.shape_cast %67 : vector<8xf32> to vector<8x1xf32>
    %c0_61 = arith.constant 0 : index
    %c0_62 = arith.constant 0 : index
    %c0_63 = arith.constant 0 : index
    %69 = vector.load %arg6[%c0_61, %c0_62, %c0_63] : memref<1x8x1xf32, #tpu.memory_space<vmem>>, vector<1x8x1xf32>
    %70 = vector.shape_cast %69 : vector<1x8x1xf32> to vector<8x1xf32>
    %71 = vector.shape_cast %68 : vector<8x1xf32> to vector<1x8x1xf32>
    tpu.vector_store %arg6[%c0_61, %c0_62, %c0_63], %71 {strides = array<i32>} : memref<1x8x1xf32, #tpu.memory_space<vmem>>, vector<1x8x1xf32>,
    return
  }
  func.func @transform_0(%arg0: i32) -> (i32, i32, i32) {
    %c0_i32 = arith.constant 0 : i32
    %c0_i32_0 = arith.constant 0 : i32
    %c0_i32_1 = arith.constant 0 : i32
    return %arg0, %c0_i32, %c0_i32_0 : i32, i32, i32
  }
  func.func @transform_1(%arg0: i32) -> (i32, i32, i32) {
    %c0_i32 = arith.constant 0 : i32
    %c0_i32_0 = arith.constant 0 : i32
    %c0_i32_1 = arith.constant 0 : i32
    %c0_i32_2 = arith.constant 0 : i32
    return %c0_i32, %c0_i32_0, %c0_i32_1 : i32, i32, i32
  }
  func.func @transform_2(%arg0: i32) -> (i32, i32) {
    %c0_i32 = arith.constant 0 : i32
    %c0_i32_0 = arith.constant 0 : i32
    %c0_i32_1 = arith.constant 0 : i32
    return %c0_i32, %c0_i32_0 : i32, i32
  }
  func.func @transform_3(%arg0: i32) -> (i32, i32, i32) {
    %c0_i32 = arith.constant 0 : i32
    %c0_i32_0 = arith.constant 0 : i32
    %c0_i32_1 = arith.constant 0 : i32
    return %arg0, %c0_i32, %c0_i32_0 : i32, i32, i32
  }
  func.func @transform_4(%arg0: i32) -> (i32, i32, i32) {
    %c0_i32 = arith.constant 0 : i32
    %c0_i32_0 = arith.constant 0 : i32
    %c0_i32_1 = arith.constant 0 : i32
    return %arg0, %c0_i32, %c0_i32_0 : i32, i32, i32
  }
  func.func @transform_5(%arg0: i32) -> (i32, i32, i32) {
    %c0_i32 = arith.constant 0 : i32
    %c0_i32_0 = arith.constant 0 : i32
    %c0_i32_1 = arith.constant 0 : i32
    return %arg0, %c0_i32, %c0_i32_0 : i32, i32, i32
  }
}

module attributes {stable_mosaic.version = 11 : i64} {
  func.func @_bn_relu_kernel(%arg0: i32, %arg1: i32, %arg2: memref<1x8x8x9xf32, #tpu.memory_space<vmem>>, %arg3: memref<8x1x1xf32, #tpu.memory_space<vmem>>, %arg4: memref<8x1x1xf32, #tpu.memory_space<vmem>>, %arg5: memref<1x8x8x8xf32, #tpu.memory_space<vmem>>) attributes {dimension_semantics = [#tpu.dimension_semantics<parallel>, #tpu.dimension_semantics<parallel>], iteration_bounds = array<i64: 2, 1>, scalar_prefetch = 0 : i64, scratch_operands = 0 : i64, tpu.core_type = #tpu.core_type<tc>, window_params = [{transform_indices = @transform_0, window_bounds = array<i64: 1, 8, 8, 9>}, {pipeline_mode = #tpu.pipeline_mode<synchronous>, transform_indices = @transform_1, window_bounds = array<i64: 8, 1, 1>}, {pipeline_mode = #tpu.pipeline_mode<synchronous>, transform_indices = @transform_2, window_bounds = array<i64: 8, 1, 1>}, {transform_indices = @transform_3, window_bounds = array<i64: 1, 8, 8, 8>}]} {
    %c0 = arith.constant 0 : index
    %c0_0 = arith.constant 0 : index
    %c0_1 = arith.constant 0 : index
    %c0_2 = arith.constant 0 : index
    %0 = vector.load %arg2[%c0, %c0_0, %c0_1, %c0_2] : memref<1x8x8x9xf32, #tpu.memory_space<vmem>>, vector<1x8x8x8xf32>
    %1 = vector.shape_cast %0 : vector<1x8x8x8xf32> to vector<8x8x8xf32>
    %c0_3 = arith.constant 0 : index
    %c0_4 = arith.constant 0 : index
    %c0_5 = arith.constant 0 : index
    %2 = vector.load %arg3[%c0_3, %c0_4, %c0_5] : memref<8x1x1xf32, #tpu.memory_space<vmem>>, vector<8x1x1xf32>
    %3 = vector.broadcast %2 : vector<8x1x1xf32> to vector<8x8x8xf32>
    %4 = arith.mulf %1, %3 : vector<8x8x8xf32>
    %c0_6 = arith.constant 0 : index
    %c0_7 = arith.constant 0 : index
    %c0_8 = arith.constant 0 : index
    %5 = vector.load %arg4[%c0_6, %c0_7, %c0_8] : memref<8x1x1xf32, #tpu.memory_space<vmem>>, vector<8x1x1xf32>
    %6 = vector.broadcast %5 : vector<8x1x1xf32> to vector<8x8x8xf32>
    %7 = arith.addf %4, %6 : vector<8x8x8xf32>
    %cst = arith.constant 0.000000e+00 : f32
    %8 = vector.broadcast %cst : f32 to vector<8x8x8xf32>
    %9 = arith.maximumf %7, %8 : vector<8x8x8xf32>
    %c0_9 = arith.constant 0 : index
    %c0_10 = arith.constant 0 : index
    %c0_11 = arith.constant 0 : index
    %c0_12 = arith.constant 0 : index
    %10 = vector.load %arg5[%c0_9, %c0_10, %c0_11, %c0_12] : memref<1x8x8x8xf32, #tpu.memory_space<vmem>>, vector<1x8x8x8xf32>
    %11 = vector.shape_cast %10 : vector<1x8x8x8xf32> to vector<8x8x8xf32>
    %12 = vector.shape_cast %9 : vector<8x8x8xf32> to vector<1x8x8x8xf32>
    tpu.vector_store %arg5[%c0_9, %c0_10, %c0_11, %c0_12], %12 {strides = array<i32>} : memref<1x8x8x8xf32, #tpu.memory_space<vmem>>, vector<1x8x8x8xf32>,
    return
  }
  func.func @transform_0(%arg0: i32, %arg1: i32) -> (i32, i32, i32, i32) {
    %c0_i32 = arith.constant 0 : i32
    %c0_i32_0 = arith.constant 0 : i32
    %c0_i32_1 = arith.constant 0 : i32
    return %arg0, %c0_i32, %arg1, %c0_i32_0 : i32, i32, i32, i32
  }
  func.func @transform_1(%arg0: i32, %arg1: i32) -> (i32, i32, i32) {
    %c0_i32 = arith.constant 0 : i32
    %c0_i32_0 = arith.constant 0 : i32
    %c0_i32_1 = arith.constant 0 : i32
    %c0_i32_2 = arith.constant 0 : i32
    return %c0_i32, %c0_i32_0, %c0_i32_1 : i32, i32, i32
  }
  func.func @transform_2(%arg0: i32, %arg1: i32) -> (i32, i32, i32) {
    %c0_i32 = arith.constant 0 : i32
    %c0_i32_0 = arith.constant 0 : i32
    %c0_i32_1 = arith.constant 0 : i32
    %c0_i32_2 = arith.constant 0 : i32
    return %c0_i32, %c0_i32_0, %c0_i32_1 : i32, i32, i32
  }
  func.func @transform_3(%arg0: i32, %arg1: i32) -> (i32, i32, i32, i32) {
    %c0_i32 = arith.constant 0 : i32
    %c0_i32_0 = arith.constant 0 : i32
    %c0_i32_1 = arith.constant 0 : i32
    return %arg0, %c0_i32, %arg1, %c0_i32_0 : i32, i32, i32, i32
  }
}

</mosaic_0001>

<llo_original>
// kernel: downsampling_forward.3
$region0: #{downsampling_forward.3}
  #allocation0 [shape = 'u32[]', space=smem, size = 0x4, offset = 0x4, fixed_abs, tag = 'smem constant byte address 0x4 - core index']
  #allocation1 [shape = 'u32[144,128]{1,0:T(1,128)}', space=vmem, size = 0x12000, scoped, tag = 'internal scratch']
  %s0 = inlined_call_operand.vmem [shape: f32[2,8,8,9], index: 0, kind: input, shape index: {}]
  %s1 = inlined_call_operand.vmem [shape: f32[8,1,1], index: 1, kind: input, shape index: {}]
  %s2 = inlined_call_operand.vmem [shape: f32[8,1,1], index: 2, kind: input, shape index: {}]
  %s3 = inlined_call_operand.hbm [shape: f32[2,8,8,8], index: 3, kind: output, shape index: {}]
  %s4 = sld [smem:[#allocation0]]
  $region45: #{downsampling_forward.3} parent=0
    _
  %s6 = ssub.s32 1, %s4
  %s7 = scalar_select 0, %s6, %s4
  $region1: #{downsampling_forward.3} parent=0
    #allocation2 [shape = 'u8[65536]{0}', space=vmem, size = 0x10000, scoped, tag = 'output window, operand 0']
    #allocation3 [shape = 's32[2]{0}', space=sflag, size = 0x8, scoped, tag = 'scoped memory for downsampling_forward.3']
    %8 = vsyncpa [#allocation3], 0
    %s9 = scalar_lea.sflag [#allocation3], 1
    %10 = vsyncpa %s9, 0
    loop: start=0, step=1, limit=4
    $region2: #{downsampling_forward.3} parent=1 // loop_pre_header
      _
    $region3: #{downsampling_forward.3} parent=1 // loop_header
      %s12 = sphi 0, %s16
      %p13 = scmp.ge.s32.totalorder %s12, 4
      %s19 = sphi 0, %s31
      %s20 = sphi 0, %s27
      %s21 = sphi 0, %s19
      %s22 = sphi 0, %s20
      %s23 = sphi 0, %s21
      %s24 = sphi 0, %s22
      %s36 = sphi 0, %s38
      %s39 = sphi 0, %s36
      %s40 = sphi 0, %s39
      %s56 = sphi 0, %s40
      %s60 = sphi 0, %s60
      %s62 = sphi 0, %s60
      %s63 = sphi 0, %s62
      %s77 = sphi 0, %s63
      %s81 = sphi 0, %s81
      %s83 = sphi 0, %s81
      %s84 = sphi 0, %s83
      %s98 = sphi 0, %s84
      %s106 = sphi 0, %s108
      %s109 = sphi 0, %s106
      %s110 = sphi 0, %s109
      %s126 = sphi 0, %s110
    $region4: #{downsampling_forward.3} parent=1 // loop_header_branch
      %15 = sbr.rel (%p13) target = $region8
    $region5: #{downsampling_forward.3} parent=1 // loop_body
      %s17 = ssub.s32 %s12, 1
      %s18 = ssub.s32 %s12, 2
      %s25 = sadd.s32 1, %s20
      %p26 = scmp.ge.s32.totalorder %s25, 1
      %s27 = scalar_select %p26, 0, %s25
      %s28 = sadd.s32 1, %s19
      %s29 = scalar_select %p26, %s28, %s19
      %p30 = scmp.ge.s32.totalorder %s29, 2
      %s31 = scalar_select %p30, 0, %s29
      %s32 = ssub.s32 %s19, %s31
      %s33 = ssub.s32 %s20, %s27
      %s34 = sor.u32 %s32, %s33
      %p35 = scmp.eq.s32.totalorder %s34, 0
      %s37 = sadd.s32 %s36, 1
      %s38 = scalar_select %p35, %s36, %s37
      %p41 = pneg %p35
      %p42 = scmp.eq.s32.totalorder %s12, 1
      %p43 = por %p41, %p42
      %p44 = scmp.ne.s32.totalorder %s36, %s39
      %p45 = scmp.eq.s32.totalorder %s12, 0
      %p46 = por %p44, %p45
      %p47 = scmp.ne.s32.totalorder %s36, %s39
      %p48 = scmp.eq.s32.totalorder %s17, 1
      %p49 = por %p47, %p48
      %p50 = scmp.ne.s32.totalorder %s39, %s40
      %p51 = scmp.eq.s32.totalorder %s17, 0
      %p52 = por %p50, %p51
      %p53 = scmp.ne.s32.totalorder %s39, %s40
      %p54 = scmp.eq.s32.totalorder %s18, 1
      %p55 = por %p53, %p54
      %p57 = scmp.ne.s32.totalorder %s40, %s56
      %p58 = scmp.eq.s32.totalorder %s18, 0
      %p59 = por %p57, %p58
      %s61 = sadd.s32 %s60, 1
      %p64 = scmp.eq.s32.totalorder %s12, 1
      %p65 = scmp.ne.s32.totalorder %s60, %s62
      %p66 = scmp.eq.s32.totalorder %s12, 0
      %p67 = por %p65, %p66
      %p68 = scmp.ne.s32.totalorder %s60, %s62
      %p69 = scmp.eq.s32.totalorder %s17, 1
      %p70 = por %p68, %p69
      %p71 = scmp.ne.s32.totalorder %s62, %s63
      %p72 = scmp.eq.s32.totalorder %s17, 0
      %p73 = por %p71, %p72
      %p74 = scmp.ne.s32.totalorder %s62, %s63
      %p75 = scmp.eq.s32.totalorder %s18, 1
      %p76 = por %p74, %p75
      %p78 = scmp.ne.s32.totalorder %s63, %s77
      %p79 = scmp.eq.s32.totalorder %s18, 0
      %p80 = por %p78, %p79
      %s82 = sadd.s32 %s81, 1
      %p85 = scmp.eq.s32.totalorder %s12, 1
      %p86 = scmp.ne.s32.totalorder %s81, %s83
      %p87 = scmp.eq.s32.totalorder %s12, 0
      %p88 = por %p86, %p87
      %p89 = scmp.ne.s32.totalorder %s81, %s83
      %p90 = scmp.eq.s32.totalorder %s17, 1
      %p91 = por %p89, %p90
      %p92 = scmp.ne.s32.totalorder %s83, %s84
      %p93 = scmp.eq.s32.totalorder %s17, 0
      %p94 = por %p92, %p93
      %p95 = scmp.ne.s32.totalorder %s83, %s84
      %p96 = scmp.eq.s32.totalorder %s18, 1
      %p97 = por %p95, %p96
      %p99 = scmp.ne.s32.totalorder %s84, %s98
      %p100 = scmp.eq.s32.totalorder %s18, 0
      %p101 = por %p99, %p100
      %s102 = ssub.s32 %s19, %s31
      %s103 = ssub.s32 %s20, %s27
      %s104 = sor.u32 %s102, %s103
      %p105 = scmp.eq.s32.totalorder %s104, 0
      %s107 = sadd.s32 %s106, 1
      %s108 = scalar_select %p105, %s106, %s107
      %p111 = pneg %p105
      %p112 = scmp.eq.s32.totalorder %s12, 1
      %p113 = por %p111, %p112
      %p114 = scmp.ne.s32.totalorder %s106, %s109
      %p115 = scmp.eq.s32.totalorder %s12, 0
      %p116 = por %p114, %p115
      %p117 = scmp.ne.s32.totalorder %s106, %s109
      %p118 = scmp.eq.s32.totalorder %s17, 1
      %p119 = por %p117, %p118
      %p120 = scmp.ne.s32.totalorder %s109, %s110
      %p121 = scmp.eq.s32.totalorder %s17, 0
      %p122 = por %p120, %p121
      %p123 = scmp.ne.s32.totalorder %s109, %s110
      %p124 = scmp.eq.s32.totalorder %s18, 1
      %p125 = por %p123, %p124
      %p127 = scmp.ne.s32.totalorder %s110, %s126
      %p128 = scmp.eq.s32.totalorder %s18, 0
      %p129 = por %p127, %p128
      %p130 = scmp.le.s32.totalorder 1, %s12
      %p131 = scmp.lt.s32.totalorder %s12, 3
      %p132 = pnand %p130, %p131
      %p133 = pneg %p132
      // Predicated region
      $region9: #{downsampling_forward.3} parent=5 // pred_check
        _
      $region10: #{downsampling_forward.3} parent=5 // pred_check_branch
        %135 = sbr.rel (%p132) target = $region12
      $region11: #{downsampling_forward.3} parent=5 // pred_region
        %s136 = ssub.s32 %s12, 1
        // Predicated region
        $region13: #{downsampling_forward.3} parent=11 // pred_check
          %p137 = pneg %p73
        $region14: #{downsampling_forward.3} parent=11 // pred_check_branch
          %139 = sbr.rel (%p137) target = $region16
        $region15: #{downsampling_forward.3} parent=11 // pred_region
          _
        $region16: #{downsampling_forward.3} parent=11 // pred_fallthru
          _
        // Predicated region
        $region17: #{downsampling_forward.3} parent=11 // pred_check
          %p140 = pneg %p94
        $region18: #{downsampling_forward.3} parent=11 // pred_check_branch
          %142 = sbr.rel (%p140) target = $region20
        $region19: #{downsampling_forward.3} parent=11 // pred_region
          _
        $region20: #{downsampling_forward.3} parent=11 // pred_fallthru
          _
      $region12: #{downsampling_forward.3} parent=5 // pred_fallthru
        _
      %p143 = scmp.lt.s32.totalorder %s12, 2
      // Predicated region
      $region21: #{downsampling_forward.3} parent=5 // pred_check
        %p144 = pneg %p143
      $region22: #{downsampling_forward.3} parent=5 // pred_check_branch
        %146 = sbr.rel (%p144) target = $region24
      $region23: #{downsampling_forward.3} parent=5 // pred_region
        // Predicated region
        $region25: #{downsampling_forward.3} parent=23 // pred_check
          %p147 = pneg %p46
        $region26: #{downsampling_forward.3} parent=23 // pred_check_branch
          %149 = sbr.rel (%p147) target = $region28
        $region27: #{downsampling_forward.3} parent=23 // pred_region
          %p150 = scmp.lt.s32.totalorder %s19, 1
          %s151 = scalar_select %p150, %s19, 1
          %p152 = scmp.lt.s32.totalorder %s20, 0
          %s153 = scalar_select %p152, %s20, 0
          %s154 = smul.addr %s151, 8
          %s155 = sadd.s32 %s153, %s154
          %s156 = smul.addr %s155, 8
          %s157 = scalar_lea.vmem %s0, %s156
        $region28: #{downsampling_forward.3} parent=23 // pred_fallthru
          _
      $region24: #{downsampling_forward.3} parent=5 // pred_fallthru
        _
      %p158 = scmp.le.s32.totalorder 1, %s12
      %p159 = scmp.lt.s32.totalorder %s12, 3
      %p160 = pnand %p158, %p159
      %p161 = pneg %p160
      // Predicated region
      $region29: #{downsampling_forward.3} parent=5 // pred_check
        _
      $region30: #{downsampling_forward.3} parent=5 // pred_check_branch
        %163 = sbr.rel (%p160) target = $region32
      $region31: #{downsampling_forward.3} parent=5 // pred_region
        %s164 = ssub.s32 %s12, 1
        %p165 = scmp.lt.s32.totalorder %s21, 1
        %s166 = scalar_select %p165, %s21, 1
        %p167 = scmp.lt.s32.totalorder %s22, 0
        %s168 = scalar_select %p167, %s22, 0
        %s169 = smul.addr %s166, 8
        %s170 = sadd.s32 %s168, %s169
        %s171 = smul.addr %s170, 8
        %s172 = scalar_lea.vmem %s0, %s171
        %p173 = pneg %p52
        %p174 = pneg %p49
        %p175 = pneg %p73
        %p176 = pneg %p70
        %p177 = pneg %p94
        %p178 = pneg %p91
        %p179 = pneg %p122
        %p180 = pneg %p119
        %s181 = sand.u32 %s109, 1
        %s182 = scalar_lea.sflag [#allocation3], %s181
        %s183 = sand.u32 %s109, 1
        %s184 = smul.addr %s183, 64
        %s185 = scalar_lea.vmem [#allocation2], %s184
        %p186 = scmp.lt.s32.totalorder %s21, 1
        %s187 = scalar_select %p186, %s21, 1
        %p188 = scmp.lt.s32.totalorder %s22, 0
        %s189 = scalar_select %p188, %s22, 0
        %s190 = smul.addr %s187, 8
        %s191 = sadd.s32 %s189, %s190
        %s192 = smul.addr %s191, 8
        %s193 = scalar_lea.vmem %s0, %s192
        %v194 = vld [vmem:[%s193] sm:$0xff]
        %v195 = vld [vmem:[%s193 + $0x8] sm:$0xff]
        %v196 = vld [vmem:[%s193 + $0x10] sm:$0xff]
        %v197 = vld [vmem:[%s193 + $0x18] sm:$0xff]
        %v198 = vld [vmem:[%s193 + $0x20] sm:$0xff]
        %v199 = vld [vmem:[%s193 + $0x28] sm:$0xff]
        %v200 = vld [vmem:[%s193 + $0x30] sm:$0xff]
        %v201 = vld [vmem:[%s193 + $0x38] sm:$0xff]
        %v202 = vld [vmem:[%s1] sm:$0x1]
        %v203 = vld [vmem:[%s1 + $0x1] sm:$0x1]
        %v204 = vld [vmem:[%s1 + $0x2] sm:$0x1]
        %v205 = vld [vmem:[%s1 + $0x3] sm:$0x1]
        %v206 = vld [vmem:[%s1 + $0x4] sm:$0x1]
        %v207 = vld [vmem:[%s1 + $0x5] sm:$0x1]
        %v208 = vld [vmem:[%s1 + $0x6] sm:$0x1]
        %v209 = vld [vmem:[%s1 + $0x7] sm:$0x1]
        %v218 = vlaneseq
        %v219 = vshrl.u32 %v218, 7
        %v220 = vsub.s32 0, %v219
        %v221 = vrot.slane %v202, %v220
        %v222 = vlaneseq
        %v223 = vshrl.u32 %v222, 7
        %v224 = vsub.s32 0, %v223
        %v225 = vrot.slane %v203, %v224
        %v226 = vlaneseq
        %v227 = vshrl.u32 %v226, 7
        %v228 = vsub.s32 0, %v227
        %v229 = vrot.slane %v204, %v228
        %v230 = vlaneseq
        %v231 = vshrl.u32 %v230, 7
        %v232 = vsub.s32 0, %v231
        %v233 = vrot.slane %v205, %v232
        %v234 = vlaneseq
        %v235 = vshrl.u32 %v234, 7
        %v236 = vsub.s32 0, %v235
        %v237 = vrot.slane %v206, %v236
        %v238 = vlaneseq
        %v239 = vshrl.u32 %v238, 7
        %v240 = vsub.s32 0, %v239
        %v241 = vrot.slane %v207, %v240
        %v242 = vlaneseq
        %v243 = vshrl.u32 %v242, 7
        %v244 = vsub.s32 0, %v243
        %v245 = vrot.slane %v208, %v244
        %v246 = vlaneseq
        %v247 = vshrl.u32 %v246, 7
        %v248 = vsub.s32 0, %v247
        %v249 = vrot.slane %v209, %v248
        %250 = vset.pattern.permute.xlu0 0
        %251 = vperm.xlu0 %250, %v221
        %v252 = vpop.permute.xlu0 %251
        %254 = vset.pattern.permute.xlu0 0
        %255 = vperm.xlu0 %254, %v225
        %v256 = vpop.permute.xlu0 %255
        %258 = vset.pattern.permute.xlu0 0
        %259 = vperm.xlu0 %258, %v229
        %v260 = vpop.permute.xlu0 %259
        %262 = vset.pattern.permute.xlu0 0
        %263 = vperm.xlu0 %262, %v233
        %v264 = vpop.permute.xlu0 %263
        %266 = vset.pattern.permute.xlu0 0
        %267 = vperm.xlu0 %266, %v237
        %v268 = vpop.permute.xlu0 %267
        %270 = vset.pattern.permute.xlu0 0
        %271 = vperm.xlu0 %270, %v241
        %v272 = vpop.permute.xlu0 %271
        %274 = vset.pattern.permute.xlu0 0
        %275 = vperm.xlu0 %274, %v245
        %v276 = vpop.permute.xlu0 %275
        %278 = vset.pattern.permute.xlu0 0
        %279 = vperm.xlu0 %278, %v249
        %v280 = vpop.permute.xlu0 %279
        %v282 = vmul.f32 %v194, %v252
        %v283 = vmul.f32 %v195, %v256
        %v284 = vmul.f32 %v196, %v260
        %v285 = vmul.f32 %v197, %v264
        %v286 = vmul.f32 %v198, %v268
        %v287 = vmul.f32 %v199, %v272
        %v288 = vmul.f32 %v200, %v276
        %v289 = vmul.f32 %v201, %v280
        %v290 = vld [vmem:[%s2] sm:$0x1]
        %v291 = vld [vmem:[%s2 + $0x1] sm:$0x1]
        %v292 = vld [vmem:[%s2 + $0x2] sm:$0x1]
        %v293 = vld [vmem:[%s2 + $0x3] sm:$0x1]
        %v294 = vld [vmem:[%s2 + $0x4] sm:$0x1]
        %v295 = vld [vmem:[%s2 + $0x5] sm:$0x1]
        %v296 = vld [vmem:[%s2 + $0x6] sm:$0x1]
        %v297 = vld [vmem:[%s2 + $0x7] sm:$0x1]
        %v306 = vlaneseq
        %v307 = vshrl.u32 %v306, 7
        %v308 = vsub.s32 0, %v307
        %v309 = vrot.slane %v290, %v308
        %v310 = vlaneseq
        %v311 = vshrl.u32 %v310, 7
        %v312 = vsub.s32 0, %v311
        %v313 = vrot.slane %v291, %v312
        %v314 = vlaneseq
        %v315 = vshrl.u32 %v314, 7
        %v316 = vsub.s32 0, %v315
        %v317 = vrot.slane %v292, %v316
        %v318 = vlaneseq
        %v319 = vshrl.u32 %v318, 7
        %v320 = vsub.s32 0, %v319
        %v321 = vrot.slane %v293, %v320
        %v322 = vlaneseq
        %v323 = vshrl.u32 %v322, 7
        %v324 = vsub.s32 0, %v323
        %v325 = vrot.slane %v294, %v324
        %v326 = vlaneseq
        %v327 = vshrl.u32 %v326, 7
        %v328 = vsub.s32 0, %v327
        %v329 = vrot.slane %v295, %v328
        %v330 = vlaneseq
        %v331 = vshrl.u32 %v330, 7
        %v332 = vsub.s32 0, %v331
        %v333 = vrot.slane %v296, %v332
        %v334 = vlaneseq
        %v335 = vshrl.u32 %v334, 7
        %v336 = vsub.s32 0, %v335
        %v337 = vrot.slane %v297, %v336
        %338 = vset.pattern.permute.xlu0 0
        %339 = vperm.xlu0 %338, %v309
        %v340 = vpop.permute.xlu0 %339
        %342 = vset.pattern.permute.xlu0 0
        %343 = vperm.xlu0 %342, %v313
        %v344 = vpop.permute.xlu0 %343
        %346 = vset.pattern.permute.xlu0 0
        %347 = vperm.xlu0 %346, %v317
        %v348 = vpop.permute.xlu0 %347
        %350 = vset.pattern.permute.xlu0 0
        %351 = vperm.xlu0 %350, %v321
        %v352 = vpop.permute.xlu0 %351
        %354 = vset.pattern.permute.xlu0 0
        %355 = vperm.xlu0 %354, %v325
        %v356 = vpop.permute.xlu0 %355
        %358 = vset.pattern.permute.xlu0 0
        %359 = vperm.xlu0 %358, %v329
        %v360 = vpop.permute.xlu0 %359
        %362 = vset.pattern.permute.xlu0 0
        %363 = vperm.xlu0 %362, %v333
        %v364 = vpop.permute.xlu0 %363
        %366 = vset.pattern.permute.xlu0 0
        %367 = vperm.xlu0 %366, %v337
        %v368 = vpop.permute.xlu0 %367
        %v370 = vadd.f32 %v282, %v340
        %v371 = vadd.f32 %v283, %v344
        %v372 = vadd.f32 %v284, %v348
        %v373 = vadd.f32 %v285, %v352
        %v374 = vadd.f32 %v286, %v356
        %v375 = vadd.f32 %v287, %v360
        %v376 = vadd.f32 %v288, %v364
        %v377 = vadd.f32 %v289, %v368
        %v378 = vmax.f32 %v370, 0.0
        %v379 = vmax.f32 %v371, 0.0
        %v380 = vmax.f32 %v372, 0.0
        %v381 = vmax.f32 %v373, 0.0
        %v382 = vmax.f32 %v374, 0.0
        %v383 = vmax.f32 %v375, 0.0
        %v384 = vmax.f32 %v376, 0.0
        %v385 = vmax.f32 %v377, 0.0
        %vm386 = vcmask 64512
        %387 = vst.msk [vmem:[%s185] sm:$0xff] %vm386, %v378
        %388 = vst.msk [vmem:[%s185 + $0x8] sm:$0xff] %vm386, %v379
        %389 = vst.msk [vmem:[%s185 + $0x10] sm:$0xff] %vm386, %v380
        %390 = vst.msk [vmem:[%s185 + $0x18] sm:$0xff] %vm386, %v381
        %391 = vst.msk [vmem:[%s185 + $0x20] sm:$0xff] %vm386, %v382
        %392 = vst.msk [vmem:[%s185 + $0x28] sm:$0xff] %vm386, %v383
        %393 = vst.msk [vmem:[%s185 + $0x30] sm:$0xff] %vm386, %v384
        %394 = vst.msk [vmem:[%s185 + $0x38] sm:$0xff] %vm386, %v385
        %s395 = sand.u32 %s109, 1
        %s396 = scalar_lea.sflag [#allocation3], %s395
        %s397 = sand.u32 %s109, 1
        %s398 = smul.addr %s397, 64
        %s399 = scalar_lea.vmem [#allocation2], %s398
        // Predicated region
        $region33: #{downsampling_forward.3} parent=31 // pred_check
          %p400 = pneg %p119
        $region34: #{downsampling_forward.3} parent=31 // pred_check_branch
          %402 = sbr.rel (%p400) target = $region36
        $region35: #{downsampling_forward.3} parent=31 // pred_region
          %s404 = ssub.s32 1024, 1024
          %405 = vsyncadd %s396, %s404
          %s406 = smul.addr %s21, 8
          %s407 = sadd.s32 %s22, %s406
          %s408 = smul.addr %s407, 128
          %s409 = scalar_lea.hbm %s3, %s408
          %s410 = sshll.u32 %s399, 4
          %s411 = int_to_ptr.vmem [resolvable:$true] %s410
          %416 = dma.vmem_to_hbm [thread:$0]  %s411, 1024, %s409, %s396, 128, 128, 8
        $region36: #{downsampling_forward.3} parent=31 // pred_fallthru
          _
      $region32: #{downsampling_forward.3} parent=5 // pred_fallthru
        _
      %p417 = scmp.le.s32.totalorder 2, %s12
      // Predicated region
      $region37: #{downsampling_forward.3} parent=5 // pred_check
        %p418 = pneg %p417
      $region38: #{downsampling_forward.3} parent=5 // pred_check_branch
        %420 = sbr.rel (%p418) target = $region40
      $region39: #{downsampling_forward.3} parent=5 // pred_region
        %s421 = ssub.s32 %s12, 2
        // Predicated region
        $region41: #{downsampling_forward.3} parent=39 // pred_check
          %p422 = pneg %p125
        $region42: #{downsampling_forward.3} parent=39 // pred_check_branch
          %424 = sbr.rel (%p422) target = $region44
        $region43: #{downsampling_forward.3} parent=39 // pred_region
          %s425 = sand.u32 %s110, 1
          %s426 = scalar_lea.sflag [#allocation3], %s425
          %s427 = sand.u32 %s110, 1
          %s428 = smul.addr %s427, 64
          %s429 = scalar_lea.vmem [#allocation2], %s428
          %430 = dma.done %s426, 1024
        $region44: #{downsampling_forward.3} parent=39 // pred_fallthru
          _
      $region40: #{downsampling_forward.3} parent=5 // pred_fallthru
        _
    $region6: #{downsampling_forward.3} parent=1 // loop_footer
      %s16 = sadd.s32 1, %s12
    $region7: #{downsampling_forward.3} parent=1 // loop_footer_branch
      %11 = sbr.rel target = $region3
    $region8: #{downsampling_forward.3} parent=1 // loop_exit
      _
    %431 = vsyncpa [#allocation3], 1
    %s432 = scalar_lea.sflag [#allocation3], 1
    %433 = vsyncpa %s432, 1

// kernel: downsampling_forward.2
$region0: #{downsampling_forward.2}
  #allocation0 [shape = 'u32[]', space=smem, size = 0x4, offset = 0x4, fixed_abs, tag = 'smem constant byte address 0x4 - core index']
  #allocation1 [shape = 'u32[144,128]{1,0:T(1,128)}', space=vmem, size = 0x12000, scoped, tag = 'internal scratch']
  %s0 = inlined_call_operand.vmem [shape: bf16[2,16,90], index: 0, kind: input, shape index: {}]
  %s1 = inlined_call_operand.vmem [shape: bf16[9,8,4], index: 1, kind: input, shape index: {}]
  %s2 = inlined_call_operand.vmem [shape: f32[1,72], index: 2, kind: input, shape index: {}]
  %s3 = inlined_call_operand.vmem [shape: f32[2,8,72], index: 3, kind: output, shape index: {0}]
  %s4 = inlined_call_operand.vmem [shape: f32[2,8,1], index: 4, kind: output, shape index: {1}]
  %s5 = inlined_call_operand.vmem [shape: f32[2,8,1], index: 5, kind: output, shape index: {2}]
  %6 = xla_tuple %s3, %s4, %s5
  %s7 = sld [smem:[#allocation0]]
  $region61: #{downsampling_forward.2} parent=0
    _
  %s9 = ssub.s32 1, %s7
  %s10 = scalar_select 0, %s9, %s7
  loop: start=0, step=1, limit=4
  $region2: #{downsampling_forward.2} parent=0 // loop_pre_header
    _
  $region3: #{downsampling_forward.2} parent=0 // loop_header
    %s12 = sphi 0, %s16
    %p13 = scmp.ge.s32.totalorder %s12, 4
    %s22 = sphi 0, %s24
    %s25 = sphi 0, %s22
    %s26 = sphi 0, %s25
    %s42 = sphi 0, %s26
    %s46 = sphi 0, %s46
    %s48 = sphi 0, %s46
    %s49 = sphi 0, %s48
    %s63 = sphi 0, %s49
    %s67 = sphi 0, %s67
    %s69 = sphi 0, %s67
    %s70 = sphi 0, %s69
    %s84 = sphi 0, %s70
    %s90 = sphi 0, %s92
    %s93 = sphi 0, %s90
    %s94 = sphi 0, %s93
    %s110 = sphi 0, %s94
    %s116 = sphi 0, %s118
    %s119 = sphi 0, %s116
    %s120 = sphi 0, %s119
    %s136 = sphi 0, %s120
    %s142 = sphi 0, %s144
    %s145 = sphi 0, %s142
    %s146 = sphi 0, %s145
    %s162 = sphi 0, %s146
  $region4: #{downsampling_forward.2} parent=0 // loop_header_branch
    %15 = sbr.rel (%p13) target = $region8
  $region5: #{downsampling_forward.2} parent=0 // loop_body
    %s17 = ssub.s32 %s12, 1
    %s18 = ssub.s32 %s12, 2
    %s19 = sadd.s32 %s12, 1
    %s20 = ssub.s32 %s12, %s19
    %p21 = scmp.eq.s32.totalorder %s20, 0
    %s23 = sadd.s32 %s22, 1
    %s24 = scalar_select %p21, %s22, %s23
    %p27 = pneg %p21
    %p28 = scmp.eq.s32.totalorder %s12, 1
    %p29 = por %p27, %p28
    %p30 = scmp.ne.s32.totalorder %s22, %s25
    %p31 = scmp.eq.s32.totalorder %s12, 0
    %p32 = por %p30, %p31
    %p33 = scmp.ne.s32.totalorder %s22, %s25
    %p34 = scmp.eq.s32.totalorder %s17, 1
    %p35 = por %p33, %p34
    %p36 = scmp.ne.s32.totalorder %s25, %s26
    %p37 = scmp.eq.s32.totalorder %s17, 0
    %p38 = por %p36, %p37
    %p39 = scmp.ne.s32.totalorder %s25, %s26
    %p40 = scmp.eq.s32.totalorder %s18, 1
    %p41 = por %p39, %p40
    %p43 = scmp.ne.s32.totalorder %s26, %s42
    %p44 = scmp.eq.s32.totalorder %s18, 0
    %p45 = por %p43, %p44
    %s47 = sadd.s32 %s46, 1
    %p50 = scmp.eq.s32.totalorder %s12, 1
    %p51 = scmp.ne.s32.totalorder %s46, %s48
    %p52 = scmp.eq.s32.totalorder %s12, 0
    %p53 = por %p51, %p52
    %p54 = scmp.ne.s32.totalorder %s46, %s48
    %p55 = scmp.eq.s32.totalorder %s17, 1
    %p56 = por %p54, %p55
    %p57 = scmp.ne.s32.totalorder %s48, %s49
    %p58 = scmp.eq.s32.totalorder %s17, 0
    %p59 = por %p57, %p58
    %p60 = scmp.ne.s32.totalorder %s48, %s49
    %p61 = scmp.eq.s32.totalorder %s18, 1
    %p62 = por %p60, %p61
    %p64 = scmp.ne.s32.totalorder %s49, %s63
    %p65 = scmp.eq.s32.totalorder %s18, 0
    %p66 = por %p64, %p65
    %s68 = sadd.s32 %s67, 1
    %p71 = scmp.eq.s32.totalorder %s12, 1
    %p72 = scmp.ne.s32.totalorder %s67, %s69
    %p73 = scmp.eq.s32.totalorder %s12, 0
    %p74 = por %p72, %p73
    %p75 = scmp.ne.s32.totalorder %s67, %s69
    %p76 = scmp.eq.s32.totalorder %s17, 1
    %p77 = por %p75, %p76
    %p78 = scmp.ne.s32.totalorder %s69, %s70
    %p79 = scmp.eq.s32.totalorder %s17, 0
    %p80 = por %p78, %p79
    %p81 = scmp.ne.s32.totalorder %s69, %s70
    %p82 = scmp.eq.s32.totalorder %s18, 1
    %p83 = por %p81, %p82
    %p85 = scmp.ne.s32.totalorder %s70, %s84
    %p86 = scmp.eq.s32.totalorder %s18, 0
    %p87 = por %p85, %p86
    %s88 = ssub.s32 %s12, %s19
    %p89 = scmp.eq.s32.totalorder %s88, 0
    %s91 = sadd.s32 %s90, 1
    %s92 = scalar_select %p89, %s90, %s91
    %p95 = pneg %p89
    %p96 = scmp.eq.s32.totalorder %s12, 1
    %p97 = por %p95, %p96
    %p98 = scmp.ne.s32.totalorder %s90, %s93
    %p99 = scmp.eq.s32.totalorder %s12, 0
    %p100 = por %p98, %p99
    %p101 = scmp.ne.s32.totalorder %s90, %s93
    %p102 = scmp.eq.s32.totalorder %s17, 1
    %p103 = por %p101, %p102
    %p104 = scmp.ne.s32.totalorder %s93, %s94
    %p105 = scmp.eq.s32.totalorder %s17, 0
    %p106 = por %p104, %p105
    %p107 = scmp.ne.s32.totalorder %s93, %s94
    %p108 = scmp.eq.s32.totalorder %s18, 1
    %p109 = por %p107, %p108
    %p111 = scmp.ne.s32.totalorder %s94, %s110
    %p112 = scmp.eq.s32.totalorder %s18, 0
    %p113 = por %p111, %p112
    %s114 = ssub.s32 %s12, %s19
    %p115 = scmp.eq.s32.totalorder %s114, 0
    %s117 = sadd.s32 %s116, 1
    %s118 = scalar_select %p115, %s116, %s117
    %p121 = pneg %p115
    %p122 = scmp.eq.s32.totalorder %s12, 1
    %p123 = por %p121, %p122
    %p124 = scmp.ne.s32.totalorder %s116, %s119
    %p125 = scmp.eq.s32.totalorder %s12, 0
    %p126 = por %p124, %p125
    %p127 = scmp.ne.s32.totalorder %s116, %s119
    %p128 = scmp.eq.s32.totalorder %s17, 1
    %p129 = por %p127, %p128
    %p130 = scmp.ne.s32.totalorder %s119, %s120
    %p131 = scmp.eq.s32.totalorder %s17, 0
    %p132 = por %p130, %p131
    %p133 = scmp.ne.s32.totalorder %s119, %s120
    %p134 = scmp.eq.s32.totalorder %s18, 1
    %p135 = por %p133, %p134
    %p137 = scmp.ne.s32.totalorder %s120, %s136
    %p138 = scmp.eq.s32.totalorder %s18, 0
    %p139 = por %p137, %p138
    %s140 = ssub.s32 %s12, %s19
    %p141 = scmp.eq.s32.totalorder %s140, 0
    %s143 = sadd.s32 %s142, 1
    %s144 = scalar_select %p141, %s142, %s143
    %p147 = pneg %p141
    %p148 = scmp.eq.s32.totalorder %s12, 1
    %p149 = por %p147, %p148
    %p150 = scmp.ne.s32.totalorder %s142, %s145
    %p151 = scmp.eq.s32.totalorder %s12, 0
    %p152 = por %p150, %p151
    %p153 = scmp.ne.s32.totalorder %s142, %s145
    %p154 = scmp.eq.s32.totalorder %s17, 1
    %p155 = por %p153, %p154
    %p156 = scmp.ne.s32.totalorder %s145, %s146
    %p157 = scmp.eq.s32.totalorder %s17, 0
    %p158 = por %p156, %p157
    %p159 = scmp.ne.s32.totalorder %s145, %s146
    %p160 = scmp.eq.s32.totalorder %s18, 1
    %p161 = por %p159, %p160
    %p163 = scmp.ne.s32.totalorder %s146, %s162
    %p164 = scmp.eq.s32.totalorder %s18, 0
    %p165 = por %p163, %p164
    %p166 = scmp.le.s32.totalorder 1, %s12
    %p167 = scmp.lt.s32.totalorder %s12, 3
    %p168 = pnand %p166, %p167
    %p169 = pneg %p168
    // Predicated region
    $region9: #{downsampling_forward.2} parent=5 // pred_check
      _
    $region10: #{downsampling_forward.2} parent=5 // pred_check_branch
      %171 = sbr.rel (%p168) target = $region12
    $region11: #{downsampling_forward.2} parent=5 // pred_region
      %s172 = ssub.s32 %s12, 1
      // Predicated region
      $region13: #{downsampling_forward.2} parent=11 // pred_check
        %p173 = pneg %p59
      $region14: #{downsampling_forward.2} parent=11 // pred_check_branch
        %175 = sbr.rel (%p173) target = $region16
      $region15: #{downsampling_forward.2} parent=11 // pred_region
        _
      $region16: #{downsampling_forward.2} parent=11 // pred_fallthru
        _
      // Predicated region
      $region17: #{downsampling_forward.2} parent=11 // pred_check
        %p176 = pneg %p80
      $region18: #{downsampling_forward.2} parent=11 // pred_check_branch
        %178 = sbr.rel (%p176) target = $region20
      $region19: #{downsampling_forward.2} parent=11 // pred_region
        _
      $region20: #{downsampling_forward.2} parent=11 // pred_fallthru
        _
    $region12: #{downsampling_forward.2} parent=5 // pred_fallthru
      _
    %p179 = scmp.lt.s32.totalorder %s12, 2
    // Predicated region
    $region21: #{downsampling_forward.2} parent=5 // pred_check
      %p180 = pneg %p179
    $region22: #{downsampling_forward.2} parent=5 // pred_check_branch
      %182 = sbr.rel (%p180) target = $region24
    $region23: #{downsampling_forward.2} parent=5 // pred_region
      // Predicated region
      $region25: #{downsampling_forward.2} parent=23 // pred_check
        %p183 = pneg %p32
      $region26: #{downsampling_forward.2} parent=23 // pred_check_branch
        %185 = sbr.rel (%p183) target = $region28
      $region27: #{downsampling_forward.2} parent=23 // pred_region
        %p186 = scmp.lt.s32.totalorder %s12, 1
        %s187 = scalar_select %p186, %s12, 1
        %s188 = smul.addr %s187, 2
        %s189 = smul.addr %s188, 4
        %s190 = scalar_lea.vmem %s0, %s189
      $region28: #{downsampling_forward.2} parent=23 // pred_fallthru
        _
    $region24: #{downsampling_forward.2} parent=5 // pred_fallthru
      _
    %p191 = scmp.le.s32.totalorder 1, %s12
    %p192 = scmp.lt.s32.totalorder %s12, 3
    %p193 = pnand %p191, %p192
    %p194 = pneg %p193
    // Predicated region
    $region29: #{downsampling_forward.2} parent=5 // pred_check
      _
    $region30: #{downsampling_forward.2} parent=5 // pred_check_branch
      %196 = sbr.rel (%p193) target = $region32
    $region31: #{downsampling_forward.2} parent=5 // pred_region
      %s197 = ssub.s32 %s12, 1
      %p198 = scmp.lt.s32.totalorder %s17, 1
      %s199 = scalar_select %p198, %s17, 1
      %s200 = smul.addr %s199, 2
      %s201 = smul.addr %s200, 4
      %s202 = scalar_lea.vmem %s0, %s201
      %p203 = pneg %p38
      %p204 = pneg %p35
      %p205 = pneg %p59
      %p206 = pneg %p56
      %p207 = pneg %p80
      %p208 = pneg %p77
      %p209 = pneg %p106
      %p210 = pneg %p103
      %p211 = scmp.lt.s32.totalorder %s17, 1
      %s212 = scalar_select %p211, %s17, 1
      %s213 = smul.addr %s212, 8
      %s214 = scalar_lea.vmem %s3, %s213
      %p215 = pneg %p132
      %p216 = pneg %p129
      %p217 = scmp.lt.s32.totalorder %s17, 1
      %s218 = scalar_select %p217, %s17, 1
      %s219 = smul.addr %s218, 8
      %s220 = scalar_lea.vmem %s4, %s219
      %p221 = pneg %p158
      %p222 = pneg %p155
      %p223 = scmp.lt.s32.totalorder %s17, 1
      %s224 = scalar_select %p223, %s17, 1
      %s225 = smul.addr %s224, 8
      %s226 = scalar_lea.vmem %s5, %s225
      %p227 = scmp.lt.s32.totalorder %s17, 1
      %s228 = scalar_select %p227, %s17, 1
      %s229 = smul.addr %s228, 2
      %s230 = smul.addr %s229, 4
      %s231 = scalar_lea.vmem %s0, %s230
      %p232 = scmp.lt.s32.totalorder %s17, 1
      %s233 = scalar_select %p232, %s17, 1
      %s234 = smul.addr %s233, 8
      %s235 = scalar_lea.vmem %s3, %s234
      %p236 = scmp.lt.s32.totalorder %s17, 1
      %s237 = scalar_select %p236, %s17, 1
      %s238 = smul.addr %s237, 8
      %s239 = scalar_lea.vmem %s4, %s238
      %p240 = scmp.lt.s32.totalorder %s17, 1
      %s241 = scalar_select %p240, %s17, 1
      %s242 = smul.addr %s241, 8
      %s243 = scalar_lea.vmem %s5, %s242
      %v245 = vld [vmem:[%s231] sm:$0x3]
      %v246 = vld [vmem:[%s1] sm:$0xf]
      %v247 = vld [vmem:[%s231] sm:$0xc]
      %s248 = scalar_lea.vmem %s1, 4
      %v249 = vld [vmem:[%s248] sm:$0xf]
      %v251 = vunpack.c.l.b16 %v247
      %v252 = vpack.c.b16 %v251, %v251
      %v253 = vrot.slane %v252, 2
      %vm254 = vcmask 31744
      %v256 = vsel %vm254, %v249, 0
      %vm258 = vcmask 1041408
      %v260 = vsel %vm258, %v253, 0
      %262 = vmatprep.subr.bf16.mxu0 0
      %263 = vmatpush1.bf16.msra.mxu0 %v260
      %264 = vmatprep.subr.bf16.mxu0 0
      %265 = vmatpush1.bf16.msra.mxu0 0
      %266 = vmatprep.subr.bf16.mxu0 0
      %267 = vmatpush1.bf16.msra.mxu0 0
      %268 = vmatprep.subr.bf16.mxu0 0
      %269 = vmatpush1.bf16.msra.mxu0 0
      %270 = vmatprep.subr.bf16.mxu0 0
      %271 = vmatpush1.bf16.msra.mxu0 0
      %272 = vmatprep.subr.bf16.mxu0 0
      %273 = vmatpush1.bf16.msra.mxu0 0
      %274 = vmatprep.subr.bf16.mxu0 0
      %275 = vmatpush1.bf16.msra.mxu0 0
      %276 = vmatprep.subr.bf16.mxu0 0
      %277 = vmatpush1.bf16.msra.mxu0 0
      %278 = vmatprep.subr.bf16.mxu0 0
      %279 = vmatpush1.bf16.msra.mxu0 0
      %280 = vmatprep.subr.bf16.mxu0 0
      %281 = vmatpush1.bf16.msra.mxu0 0
      %282 = vmatprep.subr.bf16.mxu0 0
      %283 = vmatpush1.bf16.msra.mxu0 0
      %284 = vmatprep.subr.bf16.mxu0 0
      %285 = vmatpush1.bf16.msra.mxu0 0
      %286 = vmatprep.subr.bf16.mxu0 0
      %287 = vmatpush1.bf16.msra.mxu0 0
      %288 = vmatprep.subr.bf16.mxu0 0
      %289 = vmatpush1.bf16.msra.mxu0 0
      %290 = vmatprep.subr.bf16.mxu0 0
      %291 = vmatpush1.bf16.msra.mxu0 0
      %292 = vmatprep.subr.bf16.mxu0 0
      %293 = vmatpush1.bf16.msra.mxu0 0
      %294 = vmatprep.mubr.bf16.mxu0 0
      %295 = vmatmul.mubr.bf16.gmra.mrb[0].mxu0 %v256
      %v296 = vpop.f32.mrb[0].mxu0
      %v297 = vadd.f32 0.0, %v296
      %v298 = vpop.f32.mrb[0].mxu0
      %v299 = vpop.f32.mrb[0].mxu0
      %v300 = vpop.f32.mrb[0].mxu0
      %301 = vdwg.mxu0
      %v303 = vsel %vm254, %v246, 0
      %v306 = vsel %vm258, %v245, 0
      %308 = vmatprep.subr.bf16.mxu0 0
      %309 = vmatpush1.bf16.msra.mxu0 %v306
      %310 = vmatprep.subr.bf16.mxu0 0
      %311 = vmatpush1.bf16.msra.mxu0 0
      %312 = vmatprep.subr.bf16.mxu0 0
      %313 = vmatpush1.bf16.msra.mxu0 0
      %314 = vmatprep.subr.bf16.mxu0 0
      %315 = vmatpush1.bf16.msra.mxu0 0
      %316 = vmatprep.subr.bf16.mxu0 0
      %317 = vmatpush1.bf16.msra.mxu0 0
      %318 = vmatprep.subr.bf16.mxu0 0
      %319 = vmatpush1.bf16.msra.mxu0 0
      %320 = vmatprep.subr.bf16.mxu0 0
      %321 = vmatpush1.bf16.msra.mxu0 0
      %322 = vmatprep.subr.bf16.mxu0 0
      %323 = vmatpush1.bf16.msra.mxu0 0
      %324 = vmatprep.subr.bf16.mxu0 0
      %325 = vmatpush1.bf16.msra.mxu0 0
      %326 = vmatprep.subr.bf16.mxu0 0
      %327 = vmatpush1.bf16.msra.mxu0 0
      %328 = vmatprep.subr.bf16.mxu0 0
      %329 = vmatpush1.bf16.msra.mxu0 0
      %330 = vmatprep.subr.bf16.mxu0 0
      %331 = vmatpush1.bf16.msra.mxu0 0
      %332 = vmatprep.subr.bf16.mxu0 0
      %333 = vmatpush1.bf16.msra.mxu0 0
      %334 = vmatprep.subr.bf16.mxu0 0
      %335 = vmatpush1.bf16.msra.mxu0 0
      %336 = vmatprep.subr.bf16.mxu0 0
      %337 = vmatpush1.bf16.msra.mxu0 0
      %338 = vmatprep.subr.bf16.mxu0 0
      %339 = vmatpush1.bf16.msra.mxu0 0
      %340 = vmatprep.mubr.bf16.mxu0 0
      %341 = vmatmul.mubr.bf16.gmra.mrb[0].mxu0 %v303
      %v342 = vpop.f32.mrb[0].mxu0
      %v343 = vadd.f32 %v297, %v342
      %v344 = vpop.f32.mrb[0].mxu0
      %v345 = vpop.f32.mrb[0].mxu0
      %v346 = vpop.f32.mrb[0].mxu0
      %347 = vdwg.mxu0
      %s348 = scalar_lea.vmem %s1, 8
      %v349 = vld [vmem:[%s348] sm:$0xf]
      %v351 = vunpack.c.l.b16 %v245
      %v352 = vpack.c.b16 %v351, %v351
      %353 = vrot.lane.b32.xlu0 %v352, 127
      %v354 = vpop.permute.xlu0 %353
      %v356 = vsel %vm254, %v349, 0
      %v359 = vsel %vm258, %v354, 0
      %361 = vmatprep.subr.bf16.mxu0 0
      %362 = vmatpush1.bf16.msra.mxu0 %v359
      %363 = vmatprep.subr.bf16.mxu0 0
      %364 = vmatpush1.bf16.msra.mxu0 0
      %365 = vmatprep.subr.bf16.mxu0 0
      %366 = vmatpush1.bf16.msra.mxu0 0
      %367 = vmatprep.subr.bf16.mxu0 0
      %368 = vmatpush1.bf16.msra.mxu0 0
      %369 = vmatprep.subr.bf16.mxu0 0
      %370 = vmatpush1.bf16.msra.mxu0 0
      %371 = vmatprep.subr.bf16.mxu0 0
      %372 = vmatpush1.bf16.msra.mxu0 0
      %373 = vmatprep.subr.bf16.mxu0 0
      %374 = vmatpush1.bf16.msra.mxu0 0
      %375 = vmatprep.subr.bf16.mxu0 0
      %376 = vmatpush1.bf16.msra.mxu0 0
      %377 = vmatprep.subr.bf16.mxu0 0
      %378 = vmatpush1.bf16.msra.mxu0 0
      %379 = vmatprep.subr.bf16.mxu0 0
      %380 = vmatpush1.bf16.msra.mxu0 0
      %381 = vmatprep.subr.bf16.mxu0 0
      %382 = vmatpush1.bf16.msra.mxu0 0
      %383 = vmatprep.subr.bf16.mxu0 0
      %384 = vmatpush1.bf16.msra.mxu0 0
      %385 = vmatprep.subr.bf16.mxu0 0
      %386 = vmatpush1.bf16.msra.mxu0 0
      %387 = vmatprep.subr.bf16.mxu0 0
      %388 = vmatpush1.bf16.msra.mxu0 0
      %389 = vmatprep.subr.bf16.mxu0 0
      %390 = vmatpush1.bf16.msra.mxu0 0
      %391 = vmatprep.subr.bf16.mxu0 0
      %392 = vmatpush1.bf16.msra.mxu0 0
      %393 = vmatprep.mubr.bf16.mxu0 0
      %394 = vmatmul.mubr.bf16.gmra.mrb[0].mxu0 %v356
      %v395 = vpop.f32.mrb[0].mxu0
      %v396 = vadd.f32 0.0, %v395
      %v397 = vpop.f32.mrb[0].mxu0
      %v398 = vpop.f32.mrb[0].mxu0
      %v399 = vpop.f32.mrb[0].mxu0
      %400 = vdwg.mxu0
      %v401 = vadd.f32 %v343, %v396
      %v402 = vld [vmem:[%s231 + $0x4] sm:$0x3]
      %s403 = scalar_lea.vmem %s1, 12
      %v404 = vld [vmem:[%s403] sm:$0xf]
      %v406 = vsel %vm254, %v404, 0
      %v409 = vsel %vm258, %v402, 0
      %411 = vmatprep.subr.bf16.mxu0 0
      %412 = vmatpush1.bf16.msra.mxu0 %v409
      %413 = vmatprep.subr.bf16.mxu0 0
      %414 = vmatpush1.bf16.msra.mxu0 0
      %415 = vmatprep.subr.bf16.mxu0 0
      %416 = vmatpush1.bf16.msra.mxu0 0
      %417 = vmatprep.subr.bf16.mxu0 0
      %418 = vmatpush1.bf16.msra.mxu0 0
      %419 = vmatprep.subr.bf16.mxu0 0
      %420 = vmatpush1.bf16.msra.mxu0 0
      %421 = vmatprep.subr.bf16.mxu0 0
      %422 = vmatpush1.bf16.msra.mxu0 0
      %423 = vmatprep.subr.bf16.mxu0 0
      %424 = vmatpush1.bf16.msra.mxu0 0
      %425 = vmatprep.subr.bf16.mxu0 0
      %426 = vmatpush1.bf16.msra.mxu0 0
      %427 = vmatprep.subr.bf16.mxu0 0
      %428 = vmatpush1.bf16.msra.mxu0 0
      %429 = vmatprep.subr.bf16.mxu0 0
      %430 = vmatpush1.bf16.msra.mxu0 0
      %431 = vmatprep.subr.bf16.mxu0 0
      %432 = vmatpush1.bf16.msra.mxu0 0
      %433 = vmatprep.subr.bf16.mxu0 0
      %434 = vmatpush1.bf16.msra.mxu0 0
      %435 = vmatprep.subr.bf16.mxu0 0
      %436 = vmatpush1.bf16.msra.mxu0 0
      %437 = vmatprep.subr.bf16.mxu0 0
      %438 = vmatpush1.bf16.msra.mxu0 0
      %439 = vmatprep.subr.bf16.mxu0 0
      %440 = vmatpush1.bf16.msra.mxu0 0
      %441 = vmatprep.subr.bf16.mxu0 0
      %442 = vmatpush1.bf16.msra.mxu0 0
      %443 = vmatprep.mubr.bf16.mxu0 0
      %444 = vmatmul.mubr.bf16.gmra.mrb[0].mxu0 %v406
      %v445 = vpop.f32.mrb[0].mxu0
      %v446 = vadd.f32 0.0, %v445
      %v447 = vpop.f32.mrb[0].mxu0
      %v448 = vpop.f32.mrb[0].mxu0
      %v449 = vpop.f32.mrb[0].mxu0
      %450 = vdwg.mxu0
      %v451 = vadd.f32 %v401, %v446
      %v452 = vld [vmem:[%s231 + $0x4] sm:$0xc]
      %s453 = scalar_lea.vmem %s1, 16
      %v454 = vld [vmem:[%s453] sm:$0xf]
      %v456 = vunpack.c.l.b16 %v452
      %v457 = vpack.c.b16 %v456, %v456
      %v458 = vrot.slane %v457, 2
      %v460 = vsel %vm254, %v454, 0
      %v463 = vsel %vm258, %v458, 0
      %465 = vmatprep.subr.bf16.mxu0 0
      %466 = vmatpush1.bf16.msra.mxu0 %v463
      %467 = vmatprep.subr.bf16.mxu0 0
      %468 = vmatpush1.bf16.msra.mxu0 0
      %469 = vmatprep.subr.bf16.mxu0 0
      %470 = vmatpush1.bf16.msra.mxu0 0
      %471 = vmatprep.subr.bf16.mxu0 0
      %472 = vmatpush1.bf16.msra.mxu0 0
      %473 = vmatprep.subr.bf16.mxu0 0
      %474 = vmatpush1.bf16.msra.mxu0 0
      %475 = vmatprep.subr.bf16.mxu0 0
      %476 = vmatpush1.bf16.msra.mxu0 0
      %477 = vmatprep.subr.bf16.mxu0 0
      %478 = vmatpush1.bf16.msra.mxu0 0
      %479 = vmatprep.subr.bf16.mxu0 0
      %480 = vmatpush1.bf16.msra.mxu0 0
      %481 = vmatprep.subr.bf16.mxu0 0
      %482 = vmatpush1.bf16.msra.mxu0 0
      %483 = vmatprep.subr.bf16.mxu0 0
      %484 = vmatpush1.bf16.msra.mxu0 0
      %485 = vmatprep.subr.bf16.mxu0 0
      %486 = vmatpush1.bf16.msra.mxu0 0
      %487 = vmatprep.subr.bf16.mxu0 0
      %488 = vmatpush1.bf16.msra.mxu0 0
      %489 = vmatprep.subr.bf16.mxu0 0
      %490 = vmatpush1.bf16.msra.mxu0 0
      %491 = vmatprep.subr.bf16.mxu0 0
      %492 = vmatpush1.bf16.msra.mxu0 0
      %493 = vmatprep.subr.bf16.mxu0 0
      %494 = vmatpush1.bf16.msra.mxu0 0
      %495 = vmatprep.subr.bf16.mxu0 0
      %496 = vmatpush1.bf16.msra.mxu0 0
      %497 = vmatprep.mubr.bf16.mxu0 0
      %498 = vmatmul.mubr.bf16.gmra.mrb[0].mxu0 %v460
      %v499 = vpop.f32.mrb[0].mxu0
      %v500 = vadd.f32 0.0, %v499
      %v501 = vpop.f32.mrb[0].mxu0
      %v502 = vpop.f32.mrb[0].mxu0
      %v503 = vpop.f32.mrb[0].mxu0
      %504 = vdwg.mxu0
      %v505 = vadd.f32 %v451, %v500
      %s506 = scalar_lea.vmem %s1, 20
      %v507 = vld [vmem:[%s506] sm:$0xf]
      %v509 = vunpack.c.l.b16 %v402
      %v510 = vpack.c.b16 %v509, %v509
      %511 = vrot.lane.b32.xlu0 %v510, 127
      %v512 = vpop.permute.xlu0 %511
      %v514 = vsel %vm254, %v507, 0
      %v517 = vsel %vm258, %v512, 0
      %519 = vmatprep.subr.bf16.mxu0 0
      %520 = vmatpush1.bf16.msra.mxu0 %v517
      %521 = vmatprep.subr.bf16.mxu0 0
      %522 = vmatpush1.bf16.msra.mxu0 0
      %523 = vmatprep.subr.bf16.mxu0 0
      %524 = vmatpush1.bf16.msra.mxu0 0
      %525 = vmatprep.subr.bf16.mxu0 0
      %526 = vmatpush1.bf16.msra.mxu0 0
      %527 = vmatprep.subr.bf16.mxu0 0
      %528 = vmatpush1.bf16.msra.mxu0 0
      %529 = vmatprep.subr.bf16.mxu0 0
      %530 = vmatpush1.bf16.msra.mxu0 0
      %531 = vmatprep.subr.bf16.mxu0 0
      %532 = vmatpush1.bf16.msra.mxu0 0
      %533 = vmatprep.subr.bf16.mxu0 0
      %534 = vmatpush1.bf16.msra.mxu0 0
      %535 = vmatprep.subr.bf16.mxu0 0
      %536 = vmatpush1.bf16.msra.mxu0 0
      %537 = vmatprep.subr.bf16.mxu0 0
      %538 = vmatpush1.bf16.msra.mxu0 0
      %539 = vmatprep.subr.bf16.mxu0 0
      %540 = vmatpush1.bf16.msra.mxu0 0
      %541 = vmatprep.subr.bf16.mxu0 0
      %542 = vmatpush1.bf16.msra.mxu0 0
      %543 = vmatprep.subr.bf16.mxu0 0
      %544 = vmatpush1.bf16.msra.mxu0 0
      %545 = vmatprep.subr.bf16.mxu0 0
      %546 = vmatpush1.bf16.msra.mxu0 0
      %547 = vmatprep.subr.bf16.mxu0 0
      %548 = vmatpush1.bf16.msra.mxu0 0
      %549 = vmatprep.subr.bf16.mxu0 0
      %550 = vmatpush1.bf16.msra.mxu0 0
      %551 = vmatprep.mubr.bf16.mxu0 0
      %552 = vmatmul.mubr.bf16.gmra.mrb[0].mxu0 %v514
      %v553 = vpop.f32.mrb[0].mxu0
      %v554 = vadd.f32 0.0, %v553
      %v555 = vpop.f32.mrb[0].mxu0
      %v556 = vpop.f32.mrb[0].mxu0
      %v557 = vpop.f32.mrb[0].mxu0
      %558 = vdwg.mxu0
      %v559 = vadd.f32 %v505, %v554
      %s560 = scalar_lea.vmem %s1, 24
      %v561 = vld [vmem:[%s560] sm:$0xf]
      %562 = vrot.lane.b32.xlu0 %v352, 119
      %v563 = vpop.permute.xlu0 %562
      %v565 = vsel %vm254, %v561, 0
      %v568 = vsel %vm258, %v563, 0
      %570 = vmatprep.subr.bf16.mxu0 0
      %571 = vmatpush1.bf16.msra.mxu0 %v568
      %572 = vmatprep.subr.bf16.mxu0 0
      %573 = vmatpush1.bf16.msra.mxu0 0
      %574 = vmatprep.subr.bf16.mxu0 0
      %575 = vmatpush1.bf16.msra.mxu0 0
      %576 = vmatprep.subr.bf16.mxu0 0
      %577 = vmatpush1.bf16.msra.mxu0 0
      %578 = vmatprep.subr.bf16.mxu0 0
      %579 = vmatpush1.bf16.msra.mxu0 0
      %580 = vmatprep.subr.bf16.mxu0 0
      %581 = vmatpush1.bf16.msra.mxu0 0
      %582 = vmatprep.subr.bf16.mxu0 0
      %583 = vmatpush1.bf16.msra.mxu0 0
      %584 = vmatprep.subr.bf16.mxu0 0
      %585 = vmatpush1.bf16.msra.mxu0 0
      %586 = vmatprep.subr.bf16.mxu0 0
      %587 = vmatpush1.bf16.msra.mxu0 0
      %588 = vmatprep.subr.bf16.mxu0 0
      %589 = vmatpush1.bf16.msra.mxu0 0
      %590 = vmatprep.subr.bf16.mxu0 0
      %591 = vmatpush1.bf16.msra.mxu0 0
      %592 = vmatprep.subr.bf16.mxu0 0
      %593 = vmatpush1.bf16.msra.mxu0 0
      %594 = vmatprep.subr.bf16.mxu0 0
      %595 = vmatpush1.bf16.msra.mxu0 0
      %596 = vmatprep.subr.bf16.mxu0 0
      %597 = vmatpush1.bf16.msra.mxu0 0
      %598 = vmatprep.subr.bf16.mxu0 0
      %599 = vmatpush1.bf16.msra.mxu0 0
      %600 = vmatprep.subr.bf16.mxu0 0
      %601 = vmatpush1.bf16.msra.mxu0 0
      %602 = vmatprep.mubr.bf16.mxu0 0
      %603 = vmatmul.mubr.bf16.gmra.mrb[0].mxu0 %v565
      %v604 = vpop.f32.mrb[0].mxu0
      %v605 = vadd.f32 0.0, %v604
      %v606 = vpop.f32.mrb[0].mxu0
      %v607 = vpop.f32.mrb[0].mxu0
      %v608 = vpop.f32.mrb[0].mxu0
      %609 = vdwg.mxu0
      %v610 = vadd.f32 %v559, %v605
      %s611 = scalar_lea.vmem %s1, 28
      %v612 = vld [vmem:[%s611] sm:$0xf]
      %613 = vrot.lane.b32.xlu0 %v253, 119
      %v614 = vpop.permute.xlu0 %613
      %v616 = vsel %vm254, %v612, 0
      %v619 = vsel %vm258, %v614, 0
      %621 = vmatprep.subr.bf16.mxu0 0
      %622 = vmatpush1.bf16.msra.mxu0 %v619
      %623 = vmatprep.subr.bf16.mxu0 0
      %624 = vmatpush1.bf16.msra.mxu0 0
      %625 = vmatprep.subr.bf16.mxu0 0
      %626 = vmatpush1.bf16.msra.mxu0 0
      %627 = vmatprep.subr.bf16.mxu0 0
      %628 = vmatpush1.bf16.msra.mxu0 0
      %629 = vmatprep.subr.bf16.mxu0 0
      %630 = vmatpush1.bf16.msra.mxu0 0
      %631 = vmatprep.subr.bf16.mxu0 0
      %632 = vmatpush1.bf16.msra.mxu0 0
      %633 = vmatprep.subr.bf16.mxu0 0
      %634 = vmatpush1.bf16.msra.mxu0 0
      %635 = vmatprep.subr.bf16.mxu0 0
      %636 = vmatpush1.bf16.msra.mxu0 0
      %637 = vmatprep.subr.bf16.mxu0 0
      %638 = vmatpush1.bf16.msra.mxu0 0
      %639 = vmatprep.subr.bf16.mxu0 0
      %640 = vmatpush1.bf16.msra.mxu0 0
      %641 = vmatprep.subr.bf16.mxu0 0
      %642 = vmatpush1.bf16.msra.mxu0 0
      %643 = vmatprep.subr.bf16.mxu0 0
      %644 = vmatpush1.bf16.msra.mxu0 0
      %645 = vmatprep.subr.bf16.mxu0 0
      %646 = vmatpush1.bf16.msra.mxu0 0
      %647 = vmatprep.subr.bf16.mxu0 0
      %648 = vmatpush1.bf16.msra.mxu0 0
      %649 = vmatprep.subr.bf16.mxu0 0
      %650 = vmatpush1.bf16.msra.mxu0 0
      %651 = vmatprep.subr.bf16.mxu0 0
      %652 = vmatpush1.bf16.msra.mxu0 0
      %653 = vmatprep.mubr.bf16.mxu0 0
      %654 = vmatmul.mubr.bf16.gmra.mrb[0].mxu0 %v616
      %v655 = vpop.f32.mrb[0].mxu0
      %v656 = vadd.f32 0.0, %v655
      %v657 = vpop.f32.mrb[0].mxu0
      %v658 = vpop.f32.mrb[0].mxu0
      %v659 = vpop.f32.mrb[0].mxu0
      %660 = vdwg.mxu0
      %v661 = vadd.f32 %v610, %v656
      %s662 = scalar_lea.vmem %s1, 32
      %v663 = vld [vmem:[%s662] sm:$0xf]
      %664 = vrot.lane.b32.xlu0 %v352, 118
      %v665 = vpop.permute.xlu0 %664
      %v667 = vsel %vm254, %v663, 0
      %v670 = vsel %vm258, %v665, 0
      %672 = vmatprep.subr.bf16.mxu0 0
      %673 = vmatpush1.bf16.msra.mxu0 %v670
      %674 = vmatprep.subr.bf16.mxu0 0
      %675 = vmatpush1.bf16.msra.mxu0 0
      %676 = vmatprep.subr.bf16.mxu0 0
      %677 = vmatpush1.bf16.msra.mxu0 0
      %678 = vmatprep.subr.bf16.mxu0 0
      %679 = vmatpush1.bf16.msra.mxu0 0
      %680 = vmatprep.subr.bf16.mxu0 0
      %681 = vmatpush1.bf16.msra.mxu0 0
      %682 = vmatprep.subr.bf16.mxu0 0
      %683 = vmatpush1.bf16.msra.mxu0 0
      %684 = vmatprep.subr.bf16.mxu0 0
      %685 = vmatpush1.bf16.msra.mxu0 0
      %686 = vmatprep.subr.bf16.mxu0 0
      %687 = vmatpush1.bf16.msra.mxu0 0
      %688 = vmatprep.subr.bf16.mxu0 0
      %689 = vmatpush1.bf16.msra.mxu0 0
      %690 = vmatprep.subr.bf16.mxu0 0
      %691 = vmatpush1.bf16.msra.mxu0 0
      %692 = vmatprep.subr.bf16.mxu0 0
      %693 = vmatpush1.bf16.msra.mxu0 0
      %694 = vmatprep.subr.bf16.mxu0 0
      %695 = vmatpush1.bf16.msra.mxu0 0
      %696 = vmatprep.subr.bf16.mxu0 0
      %697 = vmatpush1.bf16.msra.mxu0 0
      %698 = vmatprep.subr.bf16.mxu0 0
      %699 = vmatpush1.bf16.msra.mxu0 0
      %700 = vmatprep.subr.bf16.mxu0 0
      %701 = vmatpush1.bf16.msra.mxu0 0
      %702 = vmatprep.subr.bf16.mxu0 0
      %703 = vmatpush1.bf16.msra.mxu0 0
      %704 = vmatprep.mubr.bf16.mxu0 0
      %705 = vmatmul.mubr.bf16.gmra.mrb[0].mxu0 %v667
      %v706 = vpop.f32.mrb[0].mxu0
      %v707 = vadd.f32 0.0, %v706
      %v708 = vpop.f32.mrb[0].mxu0
      %v709 = vpop.f32.mrb[0].mxu0
      %v710 = vpop.f32.mrb[0].mxu0
      %711 = vdwg.mxu0
      %v712 = vadd.f32 %v661, %v707
      %vm713 = vcmask 588800
      %714 = vst.msk [vmem:[%s235] sm:$0xff] %vm713, %v712
      %v715 = vld [vmem:[%s2] sm:$0x1]
      %v717 = vlaneseq
      %v718 = vshrl.u32 %v717, 7
      %v719 = vsub.s32 0, %v718
      %v720 = vrot.slane %v715, %v719
      %v722 = vmul.f32 %v712, %v720
      %v723 = vsel %vm713, %v722, 0.0
      %724 = vadd.xlane.f32.xlu0 %v723
      %v725 = vpop.xlane.xlu0 %724
      %vm726 = vcmask 7168
      %727 = vst.msk [vmem:[%s239] sm:$0xff] %vm726, %v725
      %v728 = vmul.f32 %v722, %v712
      %v729 = vsel %vm713, %v728, 0.0
      %730 = vadd.xlane.f32.xlu0 %v729
      %v731 = vpop.xlane.xlu0 %730
      %732 = vst.msk [vmem:[%s243] sm:$0xff] %vm726, %v731
      %p733 = scmp.lt.s32.totalorder %s17, 1
      %s734 = scalar_select %p733, %s17, 1
      %s735 = smul.addr %s734, 8
      %s736 = scalar_lea.vmem %s3, %s735
      %p737 = scmp.lt.s32.totalorder %s17, 1
      %s738 = scalar_select %p737, %s17, 1
      %s739 = smul.addr %s738, 8
      %s740 = scalar_lea.vmem %s4, %s739
      %p741 = scmp.lt.s32.totalorder %s17, 1
      %s742 = scalar_select %p741, %s17, 1
      %s743 = smul.addr %s742, 8
      %s744 = scalar_lea.vmem %s5, %s743
      // Predicated region
      $region33: #{downsampling_forward.2} parent=31 // pred_check
        %p745 = pneg %p103
      $region34: #{downsampling_forward.2} parent=31 // pred_check_branch
        %747 = sbr.rel (%p745) target = $region36
      $region35: #{downsampling_forward.2} parent=31 // pred_region
        _
      $region36: #{downsampling_forward.2} parent=31 // pred_fallthru
        _
      // Predicated region
      $region37: #{downsampling_forward.2} parent=31 // pred_check
        %p748 = pneg %p129
      $region38: #{downsampling_forward.2} parent=31 // pred_check_branch
        %750 = sbr.rel (%p748) target = $region40
      $region39: #{downsampling_forward.2} parent=31 // pred_region
        _
      $region40: #{downsampling_forward.2} parent=31 // pred_fallthru
        _
      // Predicated region
      $region41: #{downsampling_forward.2} parent=31 // pred_check
        %p751 = pneg %p155
      $region42: #{downsampling_forward.2} parent=31 // pred_check_branch
        %753 = sbr.rel (%p751) target = $region44
      $region43: #{downsampling_forward.2} parent=31 // pred_region
        _
      $region44: #{downsampling_forward.2} parent=31 // pred_fallthru
        _
    $region32: #{downsampling_forward.2} parent=5 // pred_fallthru
      _
    %p754 = scmp.le.s32.totalorder 2, %s12
    // Predicated region
    $region45: #{downsampling_forward.2} parent=5 // pred_check
      %p755 = pneg %p754
    $region46: #{downsampling_forward.2} parent=5 // pred_check_branch
      %757 = sbr.rel (%p755) target = $region48
    $region47: #{downsampling_forward.2} parent=5 // pred_region
      %s758 = ssub.s32 %s12, 2
      // Predicated region
      $region49: #{downsampling_forward.2} parent=47 // pred_check
        %p759 = pneg %p109
      $region50: #{downsampling_forward.2} parent=47 // pred_check_branch
        %761 = sbr.rel (%p759) target = $region52
      $region51: #{downsampling_forward.2} parent=47 // pred_region
        %p762 = scmp.lt.s32.totalorder %s18, 1
        %s763 = scalar_select %p762, %s18, 1
        %s764 = smul.addr %s763, 8
        %s765 = scalar_lea.vmem %s3, %s764
      $region52: #{downsampling_forward.2} parent=47 // pred_fallthru
        _
      // Predicated region
      $region53: #{downsampling_forward.2} parent=47 // pred_check
        %p766 = pneg %p135
      $region54: #{downsampling_forward.2} parent=47 // pred_check_branch
        %768 = sbr.rel (%p766) target = $region56
      $region55: #{downsampling_forward.2} parent=47 // pred_region
        %p769 = scmp.lt.s32.totalorder %s18, 1
        %s770 = scalar_select %p769, %s18, 1
        %s771 = smul.addr %s770, 8
        %s772 = scalar_lea.vmem %s4, %s771
      $region56: #{downsampling_forward.2} parent=47 // pred_fallthru
        _
      // Predicated region
      $region57: #{downsampling_forward.2} parent=47 // pred_check
        %p773 = pneg %p161
      $region58: #{downsampling_forward.2} parent=47 // pred_check_branch
        %775 = sbr.rel (%p773) target = $region60
      $region59: #{downsampling_forward.2} parent=47 // pred_region
        %p776 = scmp.lt.s32.totalorder %s18, 1
        %s777 = scalar_select %p776, %s18, 1
        %s778 = smul.addr %s777, 8
        %s779 = scalar_lea.vmem %s5, %s778
      $region60: #{downsampling_forward.2} parent=47 // pred_fallthru
        _
    $region48: #{downsampling_forward.2} parent=5 // pred_fallthru
      _
  $region6: #{downsampling_forward.2} parent=0 // loop_footer
    %s16 = sadd.s32 1, %s12
  $region7: #{downsampling_forward.2} parent=0 // loop_footer_branch
    %11 = sbr.rel target = $region3
  $region8: #{downsampling_forward.2} parent=0 // loop_exit
    _

</llo_original>
